<compile_context>
chip_gen: v6e
topology: v6e:2x2x1
jax: 0.10.0
libtpu: 0.0.40
codegen_flags: <defaults>
</compile_context>

<pallas_src>
import functools
import math
import re

import jax
import jax.numpy as jnp
from jax.experimental import pallas as pl
from jax.experimental.pallas import tpu as pltpu


def _round_up(x, m):
    return (x + m - 1) // m * m


# Per-generation (target physical block bytes, scoped-VMEM cap, min grid steps)
_GEN_PARAMS = {
    5: (4 << 20, 64 << 20, 2),    # v5e: 0.82 TB/s; 4 MiB blocks already <10% step overhead
    6: (12 << 20, 96 << 20, 2),   # v6e: 128 MiB VMEM; bigger blocks amortize step cost
    7: (10 << 20, 48 << 20, 8),   # v7x: 64 MiB VMEM, 2 TCs -> need >= ~8 grid steps
}
_DEFAULT_PARAMS = (8 << 20, 64 << 20, 2)


def _tpu_generation():
    """Best-effort TPU generation (5/6/7...); falls back to 6."""
    try:
        kind = jax.devices()[0].device_kind.lower()
    except Exception:
        return 6
    m = re.search(r"(\d+)", kind)
    if m:
        gen = int(m.group(1))
        if 2 <= gen <= 9:
            return gen
    return 6


def _vmem_capacity_bytes():
    try:
        return int(pltpu.get_tpu_info().vmem_capacity_bytes)
    except Exception:
        return None


def _mean_kernel(m_ref, c_ref, *, n_neigh, n_group, feat, inv_k, flat):
    """Mean over the neighbour axis for one tile of folded node rows.

    flat=True : m_ref is (bt, n_group * n_neigh * feat)  -- lane-dense rows
    flat=False: m_ref is (bt, n_group * n_neigh, feat)   -- lane-padded fallback
    c_ref     : (bt, n_group * feat)                      -- lane-dense output
    """
    parts = []
    for p in range(n_group):
        segs = []
        for k in range(n_neigh):
            if flat:
                off = (p * n_neigh + k) * feat
                seg = m_ref[:, off:off + feat]
            else:
                seg = m_ref[:, p * n_neigh + k, :]
            segs.append(seg.astype(jnp.float32))
        # Pairwise (tree) accumulation: short dependence chains, fully
        # unrolled so the LLO scheduler can hide the adds under the DMAs.
        while len(segs) > 1:
            nxt = [segs[i] + segs[i + 1] for i in range(0, len(segs) - 1, 2)]
            if len(segs) % 2:
                nxt.append(segs[-1])
            segs = nxt
        parts.append(segs[0])
    row = parts[0] if n_group == 1 else jnp.concatenate(parts, axis=-1)
    c_ref[...] = (row * inv_k).astype(c_ref.dtype)


def aggregator_forward(mailbox_m, *, target_block_bytes=None):
    """Pallas implementation of Aggregator.forward (mean `aggre`).

    mailbox_m: (N, K, D) neighbour messages.
    Returns {'c': (N, D)} aggregated features (mean over K).
    """
    N, K, D = mailbox_m.shape
    dtype = mailbox_m.dtype
    itemsize = jnp.dtype(dtype).itemsize

    if N == 0:
        return {"c": jnp.zeros((0, D), dtype=dtype)}
    if K == 0:
        # torch.mean over an empty dim yields NaN; mirror that.
        return {"c": jnp.full((N, D), jnp.nan, dtype=dtype)}

    gen = _tpu_generation()
    tgt, vmem_cap, min_steps = _GEN_PARAMS.get(gen, _DEFAULT_PARAMS)
    if target_block_bytes is not None:
        tgt = int(target_block_bytes)
    cap_hw = _vmem_capacity_bytes()
    if cap_hw is not None:
        vmem_cap = min(vmem_cap, max(32 << 20, cap_hw - (16 << 20)))

    # Fold g nodes per row so input and output rows are multiples of 128 lanes.
    if D % 128 == 0:
        g = 1
    else:
        g = 128 // math.gcd(D, 128)
        if g * K > 512:
            # TODO(synk): fori_loop over groups for very large g*K instead of
            #             falling back to the un-folded (masked-store) layout.
            g = 1

    n_pad = _round_up(N, g)
    m = mailbox_m
    if n_pad != N:
        # TODO(synk): only (< g) rows of padding, but jnp.pad still copies the
        #             mailbox once; an in-kernel ragged-group tail would avoid it.
        m = jnp.pad(m, ((0, n_pad - N), (0, 0), (0, 0)))

    rows = n_pad // g
    w_in, w_out = g * K * D, g * D
    sub_align = {4: 8, 2: 16, 1: 32}.get(itemsize, 8)

    def _run(flat):
        if flat:
            m_in = m.reshape(rows, w_in)                       # free reshape
            in_row_pad_bytes = _round_up(w_in, 128) * itemsize
        else:
            m_in = m.reshape(rows, g * K, D)                   # free reshape
            in_row_pad_bytes = (_round_up(g * K, sub_align)
                                * _round_up(D, 128) * itemsize)
        out_row_pad_bytes = _round_up(w_out, 128) * itemsize
        row_bytes = in_row_pad_bytes + out_row_pad_bytes

        # Block rows: largest tile hitting the per-generation physical block
        # target, capped so (a) the grid has >= min_steps steps and (b) the
        # double-buffered in+out blocks fit under the scoped-VMEM cap.
        bt = max(sub_align, (tgt // in_row_pad_bytes) // sub_align * sub_align)
        step_cap = max(sub_align,
                       (rows // min_steps) // sub_align * sub_align)
        vmem_fit = max(sub_align,
                       ((vmem_cap - (8 << 20)) // (2 * row_bytes))
                       // sub_align * sub_align)
        bt = min(bt, step_cap, vmem_fit, _round_up(rows, sub_align))

        grid = (pl.cdiv(rows, bt),)
        in_bytes = bt * in_row_pad_bytes
        out_bytes = bt * out_row_pad_bytes
        vmem_limit = int(min(vmem_cap,
                             max(32 << 20,
                                 2 * (in_bytes + out_bytes) + (8 << 20))))

        if flat:
            in_spec = pl.BlockSpec((bt, w_in), lambda i: (i, 0))
        else:
            in_spec = pl.BlockSpec((bt, g * K, D), lambda i: (i, 0, 0))
        out_spec = pl.BlockSpec((bt, w_out), lambda i: (i, 0))

        kernel = functools.partial(_mean_kernel, n_neigh=K, n_group=g,
                                   feat=D, inv_k=1.0 / K, flat=flat)
        cost = pl.CostEstimate(
            flops=int(N) * int(K) * int(D),
            transcendentals=0,
            bytes_accessed=(int(N) * int(K) * int(D) + int(N) * int(D)) * itemsize,
        )
        return pl.pallas_call(
            kernel,
            out_shape=jax.ShapeDtypeStruct((rows, w_out), dtype),
            grid_spec=pl.GridSpec(grid=grid, in_specs=[in_spec],
                                  out_specs=out_spec),
            compiler_params=pltpu.CompilerParams(
                dimension_semantics=("parallel",),   # shards node tiles across TCs
                vmem_limit_bytes=vmem_limit,
            ),
            cost_estimate=cost,
        )(m_in)

    if D % 128 == 0:
        c_folded = _run(flat=True)      # slices are 128-aligned; no risk
    else:
        try:
            c_folded = _run(flat=True)
        except Exception:
            # TODO(synk): fallback for Mosaic builds that reject unaligned lane
            #             slices; uses the lane-padded (bt, g*K, D) layout.
            c_folded = _run(flat=False)

    c = c_folded.reshape(n_pad, D)[:N]
    return {"c": c}


if __name__ == "__main__":
    key = jax.random.PRNGKey(0)
    # Small shapes implied by the forward: N nodes, K neighbour messages, D feats.
    # D = 32 (< 128) exercises the lane-dense node-folding path; N = 200 gives a
    # ragged last grid block (no whole-array padding).
    N, K, D = 200, 4, 32
    mailbox_m = jax.random.normal(key, (N, K, D), dtype=jnp.float32)

    out = aggregator_forward(mailbox_m)
    c = jax.block_until_ready(out["c"])
    ref = jnp.mean(mailbox_m, axis=1)
    assert c.shape == (N, D)
    assert jnp.allclose(c, ref, atol=1e-5, rtol=1e-5)

    # Secondary checks: N not a multiple of g (tiny pad path) and D % 128 == 0.
    m2 = jax.random.normal(jax.random.PRNGKey(1), (37, 3, 32), dtype=jnp.float32)
    c2 = jax.block_until_ready(aggregator_forward(m2)["c"])
    assert jnp.allclose(c2, jnp.mean(m2, axis=1), atol=1e-5, rtol=1e-5)

    m3 = jax.random.normal(jax.random.PRNGKey(2), (64, 5, 128), dtype=jnp.float32)
    c3 = jax.block_until_ready(aggregator_forward(m3)["c"])
    assert jnp.allclose(c3, jnp.mean(m3, axis=1), atol=1e-5, rtol=1e-5)

    print("KERNEL_OK")
</pallas_src>

<mosaic_0001>
module attributes {stable_mosaic.version = 11 : i64} {
  func.func @_mean_kernel(%arg0: i32, %arg1: memref<24x512xf32, #tpu.memory_space<vmem>>, %arg2: memref<24x128xf32, #tpu.memory_space<vmem>>) attributes {dimension_semantics = [#tpu.dimension_semantics<parallel>], iteration_bounds = array<i64: 3>, scalar_prefetch = 0 : i64, scratch_operands = 0 : i64, tpu.core_type = #tpu.core_type<tc>, window_params = [{transform_indices = @transform_0, window_bounds = array<i64: 24, 512>}, {transform_indices = @transform_1, window_bounds = array<i64: 24, 128>}]} {
    %c0 = arith.constant 0 : index
    %c0_0 = arith.constant 0 : index
    %0 = vector.load %arg1[%c0, %c0_0] : memref<24x512xf32, #tpu.memory_space<vmem>>, vector<24x32xf32>
    %c0_1 = arith.constant 0 : index
    %c32 = arith.constant 32 : index
    %1 = vector.load %arg1[%c0_1, %c32] : memref<24x512xf32, #tpu.memory_space<vmem>>, vector<24x32xf32>
    %c0_2 = arith.constant 0 : index
    %c64 = arith.constant 64 : index
    %2 = vector.load %arg1[%c0_2, %c64] : memref<24x512xf32, #tpu.memory_space<vmem>>, vector<24x32xf32>
    %c0_3 = arith.constant 0 : index
    %c96 = arith.constant 96 : index
    %3 = vector.load %arg1[%c0_3, %c96] : memref<24x512xf32, #tpu.memory_space<vmem>>, vector<24x32xf32>
    %4 = arith.addf %0, %1 : vector<24x32xf32>
    %5 = arith.addf %2, %3 : vector<24x32xf32>
    %6 = arith.addf %4, %5 : vector<24x32xf32>
    %c0_4 = arith.constant 0 : index
    %c128 = arith.constant 128 : index
    %7 = vector.load %arg1[%c0_4, %c128] : memref<24x512xf32, #tpu.memory_space<vmem>>, vector<24x32xf32>
    %c0_5 = arith.constant 0 : index
    %c160 = arith.constant 160 : index
    %8 = vector.load %arg1[%c0_5, %c160] : memref<24x512xf32, #tpu.memory_space<vmem>>, vector<24x32xf32>
    %c0_6 = arith.constant 0 : index
    %c192 = arith.constant 192 : index
    %9 = vector.load %arg1[%c0_6, %c192] : memref<24x512xf32, #tpu.memory_space<vmem>>, vector<24x32xf32>
    %c0_7 = arith.constant 0 : index
    %c224 = arith.constant 224 : index
    %10 = vector.load %arg1[%c0_7, %c224] : memref<24x512xf32, #tpu.memory_space<vmem>>, vector<24x32xf32>
    %11 = arith.addf %7, %8 : vector<24x32xf32>
    %12 = arith.addf %9, %10 : vector<24x32xf32>
    %13 = arith.addf %11, %12 : vector<24x32xf32>
    %c0_8 = arith.constant 0 : index
    %c256 = arith.constant 256 : index
    %14 = vector.load %arg1[%c0_8, %c256] : memref<24x512xf32, #tpu.memory_space<vmem>>, vector<24x32xf32>
    %c0_9 = arith.constant 0 : index
    %c288 = arith.constant 288 : index
    %15 = vector.load %arg1[%c0_9, %c288] : memref<24x512xf32, #tpu.memory_space<vmem>>, vector<24x32xf32>
    %c0_10 = arith.constant 0 : index
    %c320 = arith.constant 320 : index
    %16 = vector.load %arg1[%c0_10, %c320] : memref<24x512xf32, #tpu.memory_space<vmem>>, vector<24x32xf32>
    %c0_11 = arith.constant 0 : index
    %c352 = arith.constant 352 : index
    %17 = vector.load %arg1[%c0_11, %c352] : memref<24x512xf32, #tpu.memory_space<vmem>>, vector<24x32xf32>
    %18 = arith.addf %14, %15 : vector<24x32xf32>
    %19 = arith.addf %16, %17 : vector<24x32xf32>
    %20 = arith.addf %18, %19 : vector<24x32xf32>
    %c0_12 = arith.constant 0 : index
    %c384 = arith.constant 384 : index
    %21 = vector.load %arg1[%c0_12, %c384] : memref<24x512xf32, #tpu.memory_space<vmem>>, vector<24x32xf32>
    %c0_13 = arith.constant 0 : index
    %c416 = arith.constant 416 : index
    %22 = vector.load %arg1[%c0_13, %c416] : memref<24x512xf32, #tpu.memory_space<vmem>>, vector<24x32xf32>
    %c0_14 = arith.constant 0 : index
    %c448 = arith.constant 448 : index
    %23 = vector.load %arg1[%c0_14, %c448] : memref<24x512xf32, #tpu.memory_space<vmem>>, vector<24x32xf32>
    %c0_15 = arith.constant 0 : index
    %c480 = arith.constant 480 : index
    %24 = vector.load %arg1[%c0_15, %c480] : memref<24x512xf32, #tpu.memory_space<vmem>>, vector<24x32xf32>
    %25 = arith.addf %21, %22 : vector<24x32xf32>
    %26 = arith.addf %23, %24 : vector<24x32xf32>
    %27 = arith.addf %25, %26 : vector<24x32xf32>
    %28 = tpu.concatenate %6, %13, %20, %27 in 1 : vector<24x32xf32>, vector<24x32xf32>, vector<24x32xf32>, vector<24x32xf32> -> vector<24x128xf32>
    %cst = arith.constant 2.500000e-01 : f32
    %29 = vector.broadcast %cst : f32 to vector<24x128xf32>
    %30 = arith.mulf %28, %29 : vector<24x128xf32>
    %c0_16 = arith.constant 0 : index
    %c0_17 = arith.constant 0 : index
    %31 = vector.load %arg2[%c0_16, %c0_17] : memref<24x128xf32, #tpu.memory_space<vmem>>, vector<24x128xf32>
    tpu.vector_store %arg2[%c0_16, %c0_17], %30 {strides = array<i32>} : memref<24x128xf32, #tpu.memory_space<vmem>>, vector<24x128xf32>,
    return
  }
  func.func @transform_0(%arg0: i32) -> (i32, i32) {
    %c0_i32 = arith.constant 0 : i32
    %c0_i32_0 = arith.constant 0 : i32
    return %arg0, %c0_i32 : i32, i32
  }
  func.func @transform_1(%arg0: i32) -> (i32, i32) {
    %c0_i32 = arith.constant 0 : i32
    %c0_i32_0 = arith.constant 0 : i32
    return %arg0, %c0_i32 : i32, i32
  }
}

module attributes {stable_mosaic.version = 11 : i64} {
  func.func @_mean_kernel(%arg0: i32, %arg1: memref<24x16x32xf32, #tpu.memory_space<vmem>>, %arg2: memref<24x128xf32, #tpu.memory_space<vmem>>) attributes {dimension_semantics = [#tpu.dimension_semantics<parallel>], iteration_bounds = array<i64: 3>, scalar_prefetch = 0 : i64, scratch_operands = 0 : i64, tpu.core_type = #tpu.core_type<tc>, window_params = [{transform_indices = @transform_0, window_bounds = array<i64: 24, 16, 32>}, {transform_indices = @transform_1, window_bounds = array<i64: 24, 128>}]} {
    %c0 = arith.constant 0 : index
    %c0_0 = arith.constant 0 : index
    %c0_1 = arith.constant 0 : index
    %0 = vector.load %arg1[%c0, %c0_0, %c0_1] : memref<24x16x32xf32, #tpu.memory_space<vmem>>, vector<24x1x32xf32>
    %1 = vector.shape_cast %0 : vector<24x1x32xf32> to vector<24x32xf32>
    %c0_2 = arith.constant 0 : index
    %c1 = arith.constant 1 : index
    %c0_3 = arith.constant 0 : index
    %2 = vector.load %arg1[%c0_2, %c1, %c0_3] : memref<24x16x32xf32, #tpu.memory_space<vmem>>, vector<24x1x32xf32>
    %3 = vector.shape_cast %2 : vector<24x1x32xf32> to vector<24x32xf32>
    %c0_4 = arith.constant 0 : index
    %c2 = arith.constant 2 : index
    %c0_5 = arith.constant 0 : index
    %4 = vector.load %arg1[%c0_4, %c2, %c0_5] : memref<24x16x32xf32, #tpu.memory_space<vmem>>, vector<24x1x32xf32>
    %5 = vector.shape_cast %4 : vector<24x1x32xf32> to vector<24x32xf32>
    %c0_6 = arith.constant 0 : index
    %c3 = arith.constant 3 : index
    %c0_7 = arith.constant 0 : index
    %6 = vector.load %arg1[%c0_6, %c3, %c0_7] : memref<24x16x32xf32, #tpu.memory_space<vmem>>, vector<24x1x32xf32>
    %7 = vector.shape_cast %6 : vector<24x1x32xf32> to vector<24x32xf32>
    %8 = arith.addf %1, %3 : vector<24x32xf32>
    %9 = arith.addf %5, %7 : vector<24x32xf32>
    %10 = arith.addf %8, %9 : vector<24x32xf32>
    %c0_8 = arith.constant 0 : index
    %c4 = arith.constant 4 : index
    %c0_9 = arith.constant 0 : index
    %11 = vector.load %arg1[%c0_8, %c4, %c0_9] : memref<24x16x32xf32, #tpu.memory_space<vmem>>, vector<24x1x32xf32>
    %12 = vector.shape_cast %11 : vector<24x1x32xf32> to vector<24x32xf32>
    %c0_10 = arith.constant 0 : index
    %c5 = arith.constant 5 : index
    %c0_11 = arith.constant 0 : index
    %13 = vector.load %arg1[%c0_10, %c5, %c0_11] : memref<24x16x32xf32, #tpu.memory_space<vmem>>, vector<24x1x32xf32>
    %14 = vector.shape_cast %13 : vector<24x1x32xf32> to vector<24x32xf32>
    %c0_12 = arith.constant 0 : index
    %c6 = arith.constant 6 : index
    %c0_13 = arith.constant 0 : index
    %15 = vector.load %arg1[%c0_12, %c6, %c0_13] : memref<24x16x32xf32, #tpu.memory_space<vmem>>, vector<24x1x32xf32>
    %16 = vector.shape_cast %15 : vector<24x1x32xf32> to vector<24x32xf32>
    %c0_14 = arith.constant 0 : index
    %c7 = arith.constant 7 : index
    %c0_15 = arith.constant 0 : index
    %17 = vector.load %arg1[%c0_14, %c7, %c0_15] : memref<24x16x32xf32, #tpu.memory_space<vmem>>, vector<24x1x32xf32>
    %18 = vector.shape_cast %17 : vector<24x1x32xf32> to vector<24x32xf32>
    %19 = arith.addf %12, %14 : vector<24x32xf32>
    %20 = arith.addf %16, %18 : vector<24x32xf32>
    %21 = arith.addf %19, %20 : vector<24x32xf32>
    %c0_16 = arith.constant 0 : index
    %c8 = arith.constant 8 : index
    %c0_17 = arith.constant 0 : index
    %22 = vector.load %arg1[%c0_16, %c8, %c0_17] : memref<24x16x32xf32, #tpu.memory_space<vmem>>, vector<24x1x32xf32>
    %23 = vector.shape_cast %22 : vector<24x1x32xf32> to vector<24x32xf32>
    %c0_18 = arith.constant 0 : index
    %c9 = arith.constant 9 : index
    %c0_19 = arith.constant 0 : index
    %24 = vector.load %arg1[%c0_18, %c9, %c0_19] : memref<24x16x32xf32, #tpu.memory_space<vmem>>, vector<24x1x32xf32>
    %25 = vector.shape_cast %24 : vector<24x1x32xf32> to vector<24x32xf32>
    %c0_20 = arith.constant 0 : index
    %c10 = arith.constant 10 : index
    %c0_21 = arith.constant 0 : index
    %26 = vector.load %arg1[%c0_20, %c10, %c0_21] : memref<24x16x32xf32, #tpu.memory_space<vmem>>, vector<24x1x32xf32>
    %27 = vector.shape_cast %26 : vector<24x1x32xf32> to vector<24x32xf32>
    %c0_22 = arith.constant 0 : index
    %c11 = arith.constant 11 : index
    %c0_23 = arith.constant 0 : index
    %28 = vector.load %arg1[%c0_22, %c11, %c0_23] : memref<24x16x32xf32, #tpu.memory_space<vmem>>, vector<24x1x32xf32>
    %29 = vector.shape_cast %28 : vector<24x1x32xf32> to vector<24x32xf32>
    %30 = arith.addf %23, %25 : vector<24x32xf32>
    %31 = arith.addf %27, %29 : vector<24x32xf32>
    %32 = arith.addf %30, %31 : vector<24x32xf32>
    %c0_24 = arith.constant 0 : index
    %c12 = arith.constant 12 : index
    %c0_25 = arith.constant 0 : index
    %33 = vector.load %arg1[%c0_24, %c12, %c0_25] : memref<24x16x32xf32, #tpu.memory_space<vmem>>, vector<24x1x32xf32>
    %34 = vector.shape_cast %33 : vector<24x1x32xf32> to vector<24x32xf32>
    %c0_26 = arith.constant 0 : index
    %c13 = arith.constant 13 : index
    %c0_27 = arith.constant 0 : index
    %35 = vector.load %arg1[%c0_26, %c13, %c0_27] : memref<24x16x32xf32, #tpu.memory_space<vmem>>, vector<24x1x32xf32>
    %36 = vector.shape_cast %35 : vector<24x1x32xf32> to vector<24x32xf32>
    %c0_28 = arith.constant 0 : index
    %c14 = arith.constant 14 : index
    %c0_29 = arith.constant 0 : index
    %37 = vector.load %arg1[%c0_28, %c14, %c0_29] : memref<24x16x32xf32, #tpu.memory_space<vmem>>, vector<24x1x32xf32>
    %38 = vector.shape_cast %37 : vector<24x1x32xf32> to vector<24x32xf32>
    %c0_30 = arith.constant 0 : index
    %c15 = arith.constant 15 : index
    %c0_31 = arith.constant 0 : index
    %39 = vector.load %arg1[%c0_30, %c15, %c0_31] : memref<24x16x32xf32, #tpu.memory_space<vmem>>, vector<24x1x32xf32>
    %40 = vector.shape_cast %39 : vector<24x1x32xf32> to vector<24x32xf32>
    %41 = arith.addf %34, %36 : vector<24x32xf32>
    %42 = arith.addf %38, %40 : vector<24x32xf32>
    %43 = arith.addf %41, %42 : vector<24x32xf32>
    %44 = tpu.concatenate %10, %21, %32, %43 in 1 : vector<24x32xf32>, vector<24x32xf32>, vector<24x32xf32>, vector<24x32xf32> -> vector<24x128xf32>
    %cst = arith.constant 2.500000e-01 : f32
    %45 = vector.broadcast %cst : f32 to vector<24x128xf32>
    %46 = arith.mulf %44, %45 : vector<24x128xf32>
    %c0_32 = arith.constant 0 : index
    %c0_33 = arith.constant 0 : index
    %47 = vector.load %arg2[%c0_32, %c0_33] : memref<24x128xf32, #tpu.memory_space<vmem>>, vector<24x128xf32>
    tpu.vector_store %arg2[%c0_32, %c0_33], %46 {strides = array<i32>} : memref<24x128xf32, #tpu.memory_space<vmem>>, vector<24x128xf32>,
    return
  }
  func.func @transform_0(%arg0: i32) -> (i32, i32, i32) {
    %c0_i32 = arith.constant 0 : i32
    %c0_i32_0 = arith.constant 0 : i32
    %c0_i32_1 = arith.constant 0 : i32
    return %arg0, %c0_i32, %c0_i32_0 : i32, i32, i32
  }
  func.func @transform_1(%arg0: i32) -> (i32, i32) {
    %c0_i32 = arith.constant 0 : i32
    %c0_i32_0 = arith.constant 0 : i32
    return %arg0, %c0_i32 : i32, i32
  }
}

</mosaic_0001>

<llo_original>
// kernel: tpu_custom_call.1
$region0: #{tpu_custom_call.1}
  #allocation0 [shape = 'u32[]', space=smem, size = 0x4, offset = 0x4, fixed_abs, tag = 'smem constant byte address 0x4 - core index']
  #allocation1 [shape = 'u32[144,128]{1,0:T(1,128)}', space=vmem, size = 0x12000, scoped, tag = 'internal scratch']
  %s0 = inlined_call_operand.hbm [shape: f32[50,512], index: 0, kind: input, shape index: {}]
  %s1 = inlined_call_operand.hbm [shape: f32[50,128], index: 1, kind: output, shape index: {}]
  %s2 = sld [smem:[#allocation0]]
  $region41: #{tpu_custom_call.1} parent=0
    _
  %s4 = ssub.s32 1, %s2
  %s5 = scalar_select 0, %s4, %s2
  $region1: #{tpu_custom_call.1} parent=0
    #allocation2 [shape = 'u8[98304]{0}', space=vmem, size = 0x18000, scoped, tag = 'input window, operand 0']
    #allocation3 [shape = 's32[2]{0}', space=sflag, size = 0x8, scoped, tag = 'scoped memory for tpu_custom_call.1']
    #allocation4 [shape = 's32[2]{0}', space=sflag, size = 0x8, scoped, tag = 'scoped memory for tpu_custom_call.1']
    #allocation5 [shape = 'u8[24576]{0}', space=vmem, size = 0x6000, scoped, tag = 'output window, operand 0']
    %6 = vsyncpa [#allocation3], 0
    %s7 = scalar_lea.sflag [#allocation3], 1
    %8 = vsyncpa %s7, 0
    %9 = vsyncpa [#allocation4], 0
    %s10 = scalar_lea.sflag [#allocation4], 1
    %11 = vsyncpa %s10, 0
    loop: start=0, step=1, limit=5
    $region2: #{tpu_custom_call.1} parent=1 // loop_pre_header
      _
    $region3: #{tpu_custom_call.1} parent=1 // loop_header
      %s13 = sphi 0, %s17
      %p14 = scmp.ge.s32.totalorder %s13, 5
      %s23 = sphi 0, %s25
      %s26 = sphi 0, %s23
      %s27 = sphi 0, %s26
      %s43 = sphi 0, %s27
      %s49 = sphi 0, %s51
      %s52 = sphi 0, %s49
      %s53 = sphi 0, %s52
      %s69 = sphi 0, %s53
    $region4: #{tpu_custom_call.1} parent=1 // loop_header_branch
      %16 = sbr.rel (%p14) target = $region8
    $region5: #{tpu_custom_call.1} parent=1 // loop_body
      %s18 = ssub.s32 %s13, 1
      %s19 = ssub.s32 %s13, 2
      %s20 = sadd.s32 %s13, 1
      %s21 = ssub.s32 %s13, %s20
      %p22 = scmp.eq.s32.totalorder %s21, 0
      %s24 = sadd.s32 %s23, 1
      %s25 = scalar_select %p22, %s23, %s24
      %p28 = pneg %p22
      %p29 = scmp.eq.s32.totalorder %s13, 2
      %p30 = por %p28, %p29
      %p31 = scmp.ne.s32.totalorder %s23, %s26
      %p32 = scmp.eq.s32.totalorder %s13, 0
      %p33 = por %p31, %p32
      %p34 = scmp.ne.s32.totalorder %s23, %s26
      %p35 = scmp.eq.s32.totalorder %s18, 2
      %p36 = por %p34, %p35
      %p37 = scmp.ne.s32.totalorder %s26, %s27
      %p38 = scmp.eq.s32.totalorder %s18, 0
      %p39 = por %p37, %p38
      %p40 = scmp.ne.s32.totalorder %s26, %s27
      %p41 = scmp.eq.s32.totalorder %s19, 2
      %p42 = por %p40, %p41
      %p44 = scmp.ne.s32.totalorder %s27, %s43
      %p45 = scmp.eq.s32.totalorder %s19, 0
      %p46 = por %p44, %p45
      %s47 = ssub.s32 %s13, %s20
      %p48 = scmp.eq.s32.totalorder %s47, 0
      %s50 = sadd.s32 %s49, 1
      %s51 = scalar_select %p48, %s49, %s50
      %p54 = pneg %p48
      %p55 = scmp.eq.s32.totalorder %s13, 2
      %p56 = por %p54, %p55
      %p57 = scmp.ne.s32.totalorder %s49, %s52
      %p58 = scmp.eq.s32.totalorder %s13, 0
      %p59 = por %p57, %p58
      %p60 = scmp.ne.s32.totalorder %s49, %s52
      %p61 = scmp.eq.s32.totalorder %s18, 2
      %p62 = por %p60, %p61
      %p63 = scmp.ne.s32.totalorder %s52, %s53
      %p64 = scmp.eq.s32.totalorder %s18, 0
      %p65 = por %p63, %p64
      %p66 = scmp.ne.s32.totalorder %s52, %s53
      %p67 = scmp.eq.s32.totalorder %s19, 2
      %p68 = por %p66, %p67
      %p70 = scmp.ne.s32.totalorder %s53, %s69
      %p71 = scmp.eq.s32.totalorder %s19, 0
      %p72 = por %p70, %p71
      %p73 = scmp.le.s32.totalorder 1, %s13
      %p74 = scmp.lt.s32.totalorder %s13, 4
      %p75 = pnand %p73, %p74
      %p76 = pneg %p75
      // Predicated region
      $region9: #{tpu_custom_call.1} parent=5 // pred_check
        _
      $region10: #{tpu_custom_call.1} parent=5 // pred_check_branch
        %78 = sbr.rel (%p75) target = $region12
      $region11: #{tpu_custom_call.1} parent=5 // pred_region
        %s79 = ssub.s32 %s13, 1
      $region12: #{tpu_custom_call.1} parent=5 // pred_fallthru
        _
      %p80 = scmp.lt.s32.totalorder %s13, 3
      // Predicated region
      $region13: #{tpu_custom_call.1} parent=5 // pred_check
        %p81 = pneg %p80
      $region14: #{tpu_custom_call.1} parent=5 // pred_check_branch
        %83 = sbr.rel (%p81) target = $region16
      $region15: #{tpu_custom_call.1} parent=5 // pred_region
        // Predicated region
        $region17: #{tpu_custom_call.1} parent=15 // pred_check
          %p84 = pneg %p33
        $region18: #{tpu_custom_call.1} parent=15 // pred_check_branch
          %86 = sbr.rel (%p84) target = $region20
        $region19: #{tpu_custom_call.1} parent=15 // pred_region
          %s87 = sand.u32 %s23, 1
          %s88 = scalar_lea.sflag [#allocation3], %s87
          %s89 = sand.u32 %s23, 1
          %s90 = smul.addr %s89, 96
          %s91 = scalar_lea.vmem [#allocation2], %s90
          %s92 = smul.u32 3, %s13
          %s93 = ssub.s32 7, %s92
          %p94 = scmp.lt.s32.totalorder %s93, 3
          %s95 = scalar_select %p94, %s93, 3
          %s96 = smul.u32 128, %s95
          %s97 = smul.u32 %s96, 4
          %s99 = ssub.s32 1536, %s97
          %100 = vsyncadd %s88, %s99
          %p101 = scmp.ne.s32.totalorder 0, %s97
          %s102 = smul.addr %s92, 4
          %s103 = smul.addr %s102, 128
          %s104 = scalar_lea.hbm %s0, %s103
          %s105 = smul.u32 32, %s95
          %s106 = sshll.u32 %s91, 4
          %s107 = int_to_ptr.vmem [resolvable:$true] %s106
          %s108 = sshll.u32 %s105, 4
          %112 = dma.hbm_to_vmem [thread:$0]  (%p101), %s104, %s108, %s107, %s88, 512, 512, 32
        $region20: #{tpu_custom_call.1} parent=15 // pred_fallthru
          _
      $region16: #{tpu_custom_call.1} parent=5 // pred_fallthru
        _
      %p113 = scmp.le.s32.totalorder 1, %s13
      %p114 = scmp.lt.s32.totalorder %s13, 4
      %p115 = pnand %p113, %p114
      %p116 = pneg %p115
      // Predicated region
      $region21: #{tpu_custom_call.1} parent=5 // pred_check
        _
      $region22: #{tpu_custom_call.1} parent=5 // pred_check_branch
        %118 = sbr.rel (%p115) target = $region24
      $region23: #{tpu_custom_call.1} parent=5 // pred_region
        %s119 = ssub.s32 %s13, 1
        %s120 = sand.u32 %s26, 1
        %s121 = scalar_lea.sflag [#allocation3], %s120
        %s122 = sand.u32 %s26, 1
        %s123 = smul.addr %s122, 96
        %s124 = scalar_lea.vmem [#allocation2], %s123
        // Predicated region
        $region25: #{tpu_custom_call.1} parent=23 // pred_check
          %p125 = pneg %p39
        $region26: #{tpu_custom_call.1} parent=23 // pred_check_branch
          %127 = sbr.rel (%p125) target = $region28
        $region27: #{tpu_custom_call.1} parent=23 // pred_region
          %128 = dma.done %s121, 1536
        $region28: #{tpu_custom_call.1} parent=23 // pred_fallthru
          _
        %s129 = sand.u32 %s26, 1
        %s130 = scalar_lea.sflag [#allocation3], %s129
        %s131 = sand.u32 %s26, 1
        %s132 = smul.addr %s131, 96
        %s133 = scalar_lea.vmem [#allocation2], %s132
        %p134 = pneg %p39
        %p135 = pneg %p36
        %p136 = pneg %p65
        %p137 = pneg %p62
        %s138 = sand.u32 %s52, 1
        %s139 = scalar_lea.sflag [#allocation4], %s138
        %s140 = sand.u32 %s52, 1
        %s141 = smul.addr %s140, 24
        %s142 = scalar_lea.vmem [#allocation5], %s141
        %s143 = smul.u32 3, %s18
        %s144 = ssub.s32 7, %s143
        %p145 = scmp.lt.s32.totalorder %s144, 3
        %s146 = scalar_select %p145, %s144, 3
        %s147 = smul.u32 128, %s146
        %s148 = smul.u32 %s147, 4
        %s149 = smul.u32 3, %s18
        %s150 = ssub.s32 7, %s149
        %p151 = scmp.lt.s32.totalorder %s150, 3
        %s152 = scalar_select %p151, %s150, 3
        %s153 = smul.u32 128, %s152
        %v154 = vld [vmem:[%s124] sm:$0xff]
        %v155 = vld [vmem:[%s124 + $0x20] sm:$0xff]
        %v156 = vld [vmem:[%s124 + $0x40] sm:$0xff]
        %160 = vrot.lane.b32.xlu0 %v154, 96
        %v161 = vpop.permute.xlu0 %160
        %162 = vrot.lane.b32.xlu0 %v155, 96
        %v163 = vpop.permute.xlu0 %162
        %164 = vrot.lane.b32.xlu0 %v156, 96
        %v165 = vpop.permute.xlu0 %164
        %v169 = vadd.f32 %v154, %v161
        %v170 = vadd.f32 %v155, %v163
        %v171 = vadd.f32 %v156, %v165
        %175 = vrot.lane.b32.xlu0 %v169, 64
        %v176 = vpop.permute.xlu0 %175
        %177 = vrot.lane.b32.xlu0 %v170, 64
        %v178 = vpop.permute.xlu0 %177
        %179 = vrot.lane.b32.xlu0 %v171, 64
        %v180 = vpop.permute.xlu0 %179
        %v184 = vadd.f32 %v169, %v176
        %v185 = vadd.f32 %v170, %v178
        %v186 = vadd.f32 %v171, %v180
        %v187 = vld [vmem:[%s124 + $0x8] sm:$0xff]
        %v188 = vld [vmem:[%s124 + $0x28] sm:$0xff]
        %v189 = vld [vmem:[%s124 + $0x48] sm:$0xff]
        %193 = vrot.lane.b32.xlu0 %v187, 96
        %v194 = vpop.permute.xlu0 %193
        %195 = vrot.lane.b32.xlu0 %v188, 96
        %v196 = vpop.permute.xlu0 %195
        %197 = vrot.lane.b32.xlu0 %v189, 96
        %v198 = vpop.permute.xlu0 %197
        %v202 = vadd.f32 %v187, %v194
        %v203 = vadd.f32 %v188, %v196
        %v204 = vadd.f32 %v189, %v198
        %208 = vrot.lane.b32.xlu0 %v202, 64
        %v209 = vpop.permute.xlu0 %208
        %210 = vrot.lane.b32.xlu0 %v203, 64
        %v211 = vpop.permute.xlu0 %210
        %212 = vrot.lane.b32.xlu0 %v204, 64
        %v213 = vpop.permute.xlu0 %212
        %v217 = vadd.f32 %v202, %v209
        %v218 = vadd.f32 %v203, %v211
        %v219 = vadd.f32 %v204, %v213
        %v220 = vld [vmem:[%s124 + $0x10] sm:$0xff]
        %v221 = vld [vmem:[%s124 + $0x30] sm:$0xff]
        %v222 = vld [vmem:[%s124 + $0x50] sm:$0xff]
        %226 = vrot.lane.b32.xlu0 %v220, 96
        %v227 = vpop.permute.xlu0 %226
        %228 = vrot.lane.b32.xlu0 %v221, 96
        %v229 = vpop.permute.xlu0 %228
        %230 = vrot.lane.b32.xlu0 %v222, 96
        %v231 = vpop.permute.xlu0 %230
        %v235 = vadd.f32 %v220, %v227
        %v236 = vadd.f32 %v221, %v229
        %v237 = vadd.f32 %v222, %v231
        %241 = vrot.lane.b32.xlu0 %v235, 64
        %v242 = vpop.permute.xlu0 %241
        %243 = vrot.lane.b32.xlu0 %v236, 64
        %v244 = vpop.permute.xlu0 %243
        %245 = vrot.lane.b32.xlu0 %v237, 64
        %v246 = vpop.permute.xlu0 %245
        %v250 = vadd.f32 %v235, %v242
        %v251 = vadd.f32 %v236, %v244
        %v252 = vadd.f32 %v237, %v246
        %v253 = vld [vmem:[%s124 + $0x18] sm:$0xff]
        %v254 = vld [vmem:[%s124 + $0x38] sm:$0xff]
        %v255 = vld [vmem:[%s124 + $0x58] sm:$0xff]
        %259 = vrot.lane.b32.xlu0 %v253, 96
        %v260 = vpop.permute.xlu0 %259
        %261 = vrot.lane.b32.xlu0 %v254, 96
        %v262 = vpop.permute.xlu0 %261
        %263 = vrot.lane.b32.xlu0 %v255, 96
        %v264 = vpop.permute.xlu0 %263
        %v268 = vadd.f32 %v253, %v260
        %v269 = vadd.f32 %v254, %v262
        %v270 = vadd.f32 %v255, %v264
        %274 = vrot.lane.b32.xlu0 %v268, 64
        %v275 = vpop.permute.xlu0 %274
        %276 = vrot.lane.b32.xlu0 %v269, 64
        %v277 = vpop.permute.xlu0 %276
        %278 = vrot.lane.b32.xlu0 %v270, 64
        %v279 = vpop.permute.xlu0 %278
        %v283 = vadd.f32 %v268, %v275
        %v284 = vadd.f32 %v269, %v277
        %v285 = vadd.f32 %v270, %v279
        %289 = vrot.lane.b32.xlu0 %v217, 32
        %v290 = vpop.permute.xlu0 %289
        %291 = vrot.lane.b32.xlu0 %v218, 32
        %v292 = vpop.permute.xlu0 %291
        %293 = vrot.lane.b32.xlu0 %v219, 32
        %v294 = vpop.permute.xlu0 %293
        %301 = vrot.lane.b32.xlu0 %v250, 64
        %v302 = vpop.permute.xlu0 %301
        %303 = vrot.lane.b32.xlu0 %v251, 64
        %v304 = vpop.permute.xlu0 %303
        %305 = vrot.lane.b32.xlu0 %v252, 64
        %v306 = vpop.permute.xlu0 %305
        %313 = vrot.lane.b32.xlu0 %v283, 96
        %v314 = vpop.permute.xlu0 %313
        %315 = vrot.lane.b32.xlu0 %v284, 96
        %v316 = vpop.permute.xlu0 %315
        %317 = vrot.lane.b32.xlu0 %v285, 96
        %v318 = vpop.permute.xlu0 %317
        %vm322 = vcmask 261120
        %v323 = vsel %vm322, %v184, %v290
        %v324 = vsel %vm322, %v185, %v292
        %v325 = vsel %vm322, %v186, %v294
        %vm326 = vcmask 523264
        %v327 = vsel %vm326, %v323, %v302
        %v328 = vsel %vm326, %v324, %v304
        %v329 = vsel %vm326, %v325, %v306
        %vm330 = vcmask 785408
        %v331 = vsel %vm330, %v327, %v314
        %v332 = vsel %vm330, %v328, %v316
        %v333 = vsel %vm330, %v329, %v318
        %v334 = vmul.f32 %v331, 0.25
        %v335 = vmul.f32 %v332, 0.25
        %v336 = vmul.f32 %v333, 0.25
        %337 = vst [vmem:[%s142] sm:$0xff] %v334
        %338 = vst [vmem:[%s142 + $0x8] sm:$0xff] %v335
        %339 = vst [vmem:[%s142 + $0x10] sm:$0xff] %v336
        %s340 = sand.u32 %s52, 1
        %s341 = scalar_lea.sflag [#allocation4], %s340
        %s342 = sand.u32 %s52, 1
        %s343 = smul.addr %s342, 24
        %s344 = scalar_lea.vmem [#allocation5], %s343
        // Predicated region
        $region29: #{tpu_custom_call.1} parent=23 // pred_check
          %p345 = pneg %p62
        $region30: #{tpu_custom_call.1} parent=23 // pred_check_branch
          %347 = sbr.rel (%p345) target = $region32
        $region31: #{tpu_custom_call.1} parent=23 // pred_region
          %s348 = smul.u32 3, %s18
          %s349 = ssub.s32 7, %s348
          %p350 = scmp.lt.s32.totalorder %s349, 3
          %s351 = scalar_select %p350, %s349, 3
          %s352 = smul.u32 128, %s351
          %s354 = ssub.s32 384, %s352
          %355 = vsyncadd %s341, %s354
          %p356 = scmp.ne.s32.totalorder 0, %s352
          %s357 = smul.addr %s348, 128
          %s358 = scalar_lea.hbm %s1, %s357
          %s359 = smul.u32 8, %s351
          %s360 = sshll.u32 %s344, 4
          %s361 = int_to_ptr.vmem [resolvable:$true] %s360
          %s362 = sshll.u32 %s359, 4
          %366 = dma.vmem_to_hbm [thread:$0]  (%p356), %s361, %s362, %s358, %s341, 128, 128, 8
        $region32: #{tpu_custom_call.1} parent=23 // pred_fallthru
          _
      $region24: #{tpu_custom_call.1} parent=5 // pred_fallthru
        _
      %p367 = scmp.le.s32.totalorder 2, %s13
      // Predicated region
      $region33: #{tpu_custom_call.1} parent=5 // pred_check
        %p368 = pneg %p367
      $region34: #{tpu_custom_call.1} parent=5 // pred_check_branch
        %370 = sbr.rel (%p368) target = $region36
      $region35: #{tpu_custom_call.1} parent=5 // pred_region
        %s371 = ssub.s32 %s13, 2
        // Predicated region
        $region37: #{tpu_custom_call.1} parent=35 // pred_check
          %p372 = pneg %p68
        $region38: #{tpu_custom_call.1} parent=35 // pred_check_branch
          %374 = sbr.rel (%p372) target = $region40
        $region39: #{tpu_custom_call.1} parent=35 // pred_region
          %s375 = sand.u32 %s53, 1
          %s376 = scalar_lea.sflag [#allocation4], %s375
          %s377 = sand.u32 %s53, 1
          %s378 = smul.addr %s377, 24
          %s379 = scalar_lea.vmem [#allocation5], %s378
          %380 = dma.done %s376, 384
        $region40: #{tpu_custom_call.1} parent=35 // pred_fallthru
          _
      $region36: #{tpu_custom_call.1} parent=5 // pred_fallthru
        _
    $region6: #{tpu_custom_call.1} parent=1 // loop_footer
      %s17 = sadd.s32 1, %s13
    $region7: #{tpu_custom_call.1} parent=1 // loop_footer_branch
      %12 = sbr.rel target = $region3
    $region8: #{tpu_custom_call.1} parent=1 // loop_exit
      _
    %381 = vsyncpa [#allocation3], 1
    %s382 = scalar_lea.sflag [#allocation3], 1
    %383 = vsyncpa %s382, 1
    %384 = vsyncpa [#allocation4], 1
    %s385 = scalar_lea.sflag [#allocation4], 1
    %386 = vsyncpa %s385, 1

// kernel: tpu_custom_call.1
$region0: #{tpu_custom_call.1}
  #allocation0 [shape = 'u32[]', space=smem, size = 0x4, offset = 0x4, fixed_abs, tag = 'smem constant byte address 0x4 - core index']
  #allocation1 [shape = 'u32[144,128]{1,0:T(1,128)}', space=vmem, size = 0x12000, scoped, tag = 'internal scratch']
  %s0 = inlined_call_operand.vmem [shape: f32[50,16,32], index: 0, kind: input, shape index: {}]
  %s1 = inlined_call_operand.hbm [shape: f32[50,128], index: 1, kind: output, shape index: {}]
  %s2 = sld [smem:[#allocation0]]
  $region37: #{tpu_custom_call.1} parent=0
    _
  %s4 = ssub.s32 1, %s2
  %s5 = scalar_select 0, %s4, %s2
  $region1: #{tpu_custom_call.1} parent=0
    #allocation2 [shape = 'u8[24576]{0}', space=vmem, size = 0x6000, scoped, tag = 'output window, operand 0']
    #allocation3 [shape = 's32[2]{0}', space=sflag, size = 0x8, scoped, tag = 'scoped memory for tpu_custom_call.1']
    %6 = vsyncpa [#allocation3], 0
    %s7 = scalar_lea.sflag [#allocation3], 1
    %8 = vsyncpa %s7, 0
    loop: start=0, step=1, limit=5
    $region2: #{tpu_custom_call.1} parent=1 // loop_pre_header
      _
    $region3: #{tpu_custom_call.1} parent=1 // loop_header
      %s10 = sphi 0, %s14
      %p11 = scmp.ge.s32.totalorder %s10, 5
      %s20 = sphi 0, %s22
      %s23 = sphi 0, %s20
      %s24 = sphi 0, %s23
      %s40 = sphi 0, %s24
      %s46 = sphi 0, %s48
      %s49 = sphi 0, %s46
      %s50 = sphi 0, %s49
      %s66 = sphi 0, %s50
    $region4: #{tpu_custom_call.1} parent=1 // loop_header_branch
      %13 = sbr.rel (%p11) target = $region8
    $region5: #{tpu_custom_call.1} parent=1 // loop_body
      %s15 = ssub.s32 %s10, 1
      %s16 = ssub.s32 %s10, 2
      %s17 = sadd.s32 %s10, 1
      %s18 = ssub.s32 %s10, %s17
      %p19 = scmp.eq.s32.totalorder %s18, 0
      %s21 = sadd.s32 %s20, 1
      %s22 = scalar_select %p19, %s20, %s21
      %p25 = pneg %p19
      %p26 = scmp.eq.s32.totalorder %s10, 2
      %p27 = por %p25, %p26
      %p28 = scmp.ne.s32.totalorder %s20, %s23
      %p29 = scmp.eq.s32.totalorder %s10, 0
      %p30 = por %p28, %p29
      %p31 = scmp.ne.s32.totalorder %s20, %s23
      %p32 = scmp.eq.s32.totalorder %s15, 2
      %p33 = por %p31, %p32
      %p34 = scmp.ne.s32.totalorder %s23, %s24
      %p35 = scmp.eq.s32.totalorder %s15, 0
      %p36 = por %p34, %p35
      %p37 = scmp.ne.s32.totalorder %s23, %s24
      %p38 = scmp.eq.s32.totalorder %s16, 2
      %p39 = por %p37, %p38
      %p41 = scmp.ne.s32.totalorder %s24, %s40
      %p42 = scmp.eq.s32.totalorder %s16, 0
      %p43 = por %p41, %p42
      %s44 = ssub.s32 %s10, %s17
      %p45 = scmp.eq.s32.totalorder %s44, 0
      %s47 = sadd.s32 %s46, 1
      %s48 = scalar_select %p45, %s46, %s47
      %p51 = pneg %p45
      %p52 = scmp.eq.s32.totalorder %s10, 2
      %p53 = por %p51, %p52
      %p54 = scmp.ne.s32.totalorder %s46, %s49
      %p55 = scmp.eq.s32.totalorder %s10, 0
      %p56 = por %p54, %p55
      %p57 = scmp.ne.s32.totalorder %s46, %s49
      %p58 = scmp.eq.s32.totalorder %s15, 2
      %p59 = por %p57, %p58
      %p60 = scmp.ne.s32.totalorder %s49, %s50
      %p61 = scmp.eq.s32.totalorder %s15, 0
      %p62 = por %p60, %p61
      %p63 = scmp.ne.s32.totalorder %s49, %s50
      %p64 = scmp.eq.s32.totalorder %s16, 2
      %p65 = por %p63, %p64
      %p67 = scmp.ne.s32.totalorder %s50, %s66
      %p68 = scmp.eq.s32.totalorder %s16, 0
      %p69 = por %p67, %p68
      %p70 = scmp.le.s32.totalorder 1, %s10
      %p71 = scmp.lt.s32.totalorder %s10, 4
      %p72 = pnand %p70, %p71
      %p73 = pneg %p72
      // Predicated region
      $region9: #{tpu_custom_call.1} parent=5 // pred_check
        _
      $region10: #{tpu_custom_call.1} parent=5 // pred_check_branch
        %75 = sbr.rel (%p72) target = $region12
      $region11: #{tpu_custom_call.1} parent=5 // pred_region
        %s76 = ssub.s32 %s10, 1
      $region12: #{tpu_custom_call.1} parent=5 // pred_fallthru
        _
      %p77 = scmp.lt.s32.totalorder %s10, 3
      // Predicated region
      $region13: #{tpu_custom_call.1} parent=5 // pred_check
        %p78 = pneg %p77
      $region14: #{tpu_custom_call.1} parent=5 // pred_check_branch
        %80 = sbr.rel (%p78) target = $region16
      $region15: #{tpu_custom_call.1} parent=5 // pred_region
        // Predicated region
        $region17: #{tpu_custom_call.1} parent=15 // pred_check
          %p81 = pneg %p30
        $region18: #{tpu_custom_call.1} parent=15 // pred_check_branch
          %83 = sbr.rel (%p81) target = $region20
        $region19: #{tpu_custom_call.1} parent=15 // pred_region
          %s84 = smul.u32 24, %s10
          %s85 = ssub.s32 50, %s84
          %p86 = scmp.lt.s32.totalorder %s85, 24
          %s87 = scalar_select %p86, %s85, 24
          %s88 = smul.u32 128, %s87
          %s89 = smul.u32 %s88, 2
          %p90 = scmp.lt.s32.totalorder %s84, 49
          %s91 = scalar_select %p90, %s84, 49
          %s92 = smul.addr %s91, 2
          %s93 = smul.addr %s92, 8
          %s94 = scalar_lea.vmem %s0, %s93
          %s95 = smul.u32 24, %s10
          %s96 = ssub.s32 50, %s95
          %p97 = scmp.lt.s32.totalorder %s96, 24
          %s98 = scalar_select %p97, %s96, 24
          %s99 = smul.u32 128, %s98
          %s100 = smul.u32 %s99, 2
        $region20: #{tpu_custom_call.1} parent=15 // pred_fallthru
          _
      $region16: #{tpu_custom_call.1} parent=5 // pred_fallthru
        _
      %p101 = scmp.le.s32.totalorder 1, %s10
      %p102 = scmp.lt.s32.totalorder %s10, 4
      %p103 = pnand %p101, %p102
      %p104 = pneg %p103
      // Predicated region
      $region21: #{tpu_custom_call.1} parent=5 // pred_check
        _
      $region22: #{tpu_custom_call.1} parent=5 // pred_check_branch
        %106 = sbr.rel (%p103) target = $region24
      $region23: #{tpu_custom_call.1} parent=5 // pred_region
        %s107 = ssub.s32 %s10, 1
        %s108 = smul.u32 24, %s15
        %s109 = ssub.s32 50, %s108
        %p110 = scmp.lt.s32.totalorder %s109, 24
        %s111 = scalar_select %p110, %s109, 24
        %s112 = smul.u32 128, %s111
        %s113 = smul.u32 %s112, 2
        %p114 = scmp.lt.s32.totalorder %s108, 49
        %s115 = scalar_select %p114, %s108, 49
        %s116 = smul.addr %s115, 2
        %s117 = smul.addr %s116, 8
        %s118 = scalar_lea.vmem %s0, %s117
        %p119 = pneg %p36
        %p120 = pneg %p33
        %p121 = pneg %p62
        %p122 = pneg %p59
        %s123 = sand.u32 %s49, 1
        %s124 = scalar_lea.sflag [#allocation3], %s123
        %s125 = sand.u32 %s49, 1
        %s126 = smul.addr %s125, 24
        %s127 = scalar_lea.vmem [#allocation2], %s126
        %s128 = smul.u32 24, %s15
        %s129 = ssub.s32 50, %s128
        %p130 = scmp.lt.s32.totalorder %s129, 24
        %s131 = scalar_select %p130, %s129, 24
        %s132 = smul.u32 128, %s131
        %s133 = smul.u32 %s132, 2
        %p134 = scmp.lt.s32.totalorder %s128, 49
        %s135 = scalar_select %p134, %s128, 49
        %s136 = smul.addr %s135, 2
        %s137 = smul.addr %s136, 8
        %s138 = scalar_lea.vmem %s0, %s137
        %s139 = smul.u32 24, %s15
        %s140 = ssub.s32 50, %s139
        %p141 = scmp.lt.s32.totalorder %s140, 24
        %s142 = scalar_select %p141, %s140, 24
        %s143 = smul.u32 128, %s142
        %s144 = smul.u32 %s143, 2
        %s145 = smul.u32 3, %s15
        %s146 = ssub.s32 7, %s145
        %p147 = scmp.lt.s32.totalorder %s146, 3
        %s148 = scalar_select %p147, %s146, 3
        %s149 = smul.u32 128, %s148
        %v150 = vld [vmem:[%s138] sm:$0x1]
        %v151 = vld [vmem:[%s138 + $0x10] sm:$0x1]
        %v152 = vld [vmem:[%s138 + $0x20] sm:$0x1]
        %v153 = vld [vmem:[%s138 + $0x30] sm:$0x1]
        %v154 = vld [vmem:[%s138 + $0x40] sm:$0x1]
        %v155 = vld [vmem:[%s138 + $0x50] sm:$0x1]
        %v156 = vld [vmem:[%s138 + $0x60] sm:$0x1]
        %v157 = vld [vmem:[%s138 + $0x70] sm:$0x1]
        %v158 = vld [vmem:[%s138 + $0x80] sm:$0x1]
        %v159 = vld [vmem:[%s138 + $0x90] sm:$0x1]
        %v160 = vld [vmem:[%s138 + $0xa0] sm:$0x1]
        %v161 = vld [vmem:[%s138 + $0xb0] sm:$0x1]
        %v162 = vld [vmem:[%s138 + $0xc0] sm:$0x1]
        %v163 = vld [vmem:[%s138 + $0xd0] sm:$0x1]
        %v164 = vld [vmem:[%s138 + $0xe0] sm:$0x1]
        %v165 = vld [vmem:[%s138 + $0xf0] sm:$0x1]
        %v166 = vld [vmem:[%s138 + $0x100] sm:$0x1]
        %v167 = vld [vmem:[%s138 + $0x110] sm:$0x1]
        %v168 = vld [vmem:[%s138 + $0x120] sm:$0x1]
        %v169 = vld [vmem:[%s138 + $0x130] sm:$0x1]
        %v170 = vld [vmem:[%s138 + $0x140] sm:$0x1]
        %v171 = vld [vmem:[%s138 + $0x150] sm:$0x1]
        %v172 = vld [vmem:[%s138 + $0x160] sm:$0x1]
        %v173 = vld [vmem:[%s138 + $0x170] sm:$0x1]
        %v174 = vld [vmem:[%s138 + $0x1] sm:$0x1]
        %v175 = vld [vmem:[%s138 + $0x11] sm:$0x1]
        %v176 = vld [vmem:[%s138 + $0x21] sm:$0x1]
        %v177 = vld [vmem:[%s138 + $0x31] sm:$0x1]
        %v178 = vld [vmem:[%s138 + $0x41] sm:$0x1]
        %v179 = vld [vmem:[%s138 + $0x51] sm:$0x1]
        %v180 = vld [vmem:[%s138 + $0x61] sm:$0x1]
        %v181 = vld [vmem:[%s138 + $0x71] sm:$0x1]
        %v182 = vld [vmem:[%s138 + $0x81] sm:$0x1]
        %v183 = vld [vmem:[%s138 + $0x91] sm:$0x1]
        %v184 = vld [vmem:[%s138 + $0xa1] sm:$0x1]
        %v185 = vld [vmem:[%s138 + $0xb1] sm:$0x1]
        %v186 = vld [vmem:[%s138 + $0xc1] sm:$0x1]
        %v187 = vld [vmem:[%s138 + $0xd1] sm:$0x1]
        %v188 = vld [vmem:[%s138 + $0xe1] sm:$0x1]
        %v189 = vld [vmem:[%s138 + $0xf1] sm:$0x1]
        %v190 = vld [vmem:[%s138 + $0x101] sm:$0x1]
        %v191 = vld [vmem:[%s138 + $0x111] sm:$0x1]
        %v192 = vld [vmem:[%s138 + $0x121] sm:$0x1]
        %v193 = vld [vmem:[%s138 + $0x131] sm:$0x1]
        %v194 = vld [vmem:[%s138 + $0x141] sm:$0x1]
        %v195 = vld [vmem:[%s138 + $0x151] sm:$0x1]
        %v196 = vld [vmem:[%s138 + $0x161] sm:$0x1]
        %v197 = vld [vmem:[%s138 + $0x171] sm:$0x1]
        %v198 = vld [vmem:[%s138 + $0x2] sm:$0x1]
        %v199 = vld [vmem:[%s138 + $0x12] sm:$0x1]
        %v200 = vld [vmem:[%s138 + $0x22] sm:$0x1]
        %v201 = vld [vmem:[%s138 + $0x32] sm:$0x1]
        %v202 = vld [vmem:[%s138 + $0x42] sm:$0x1]
        %v203 = vld [vmem:[%s138 + $0x52] sm:$0x1]
        %v204 = vld [vmem:[%s138 + $0x62] sm:$0x1]
        %v205 = vld [vmem:[%s138 + $0x72] sm:$0x1]
        %v206 = vld [vmem:[%s138 + $0x82] sm:$0x1]
        %v207 = vld [vmem:[%s138 + $0x92] sm:$0x1]
        %v208 = vld [vmem:[%s138 + $0xa2] sm:$0x1]
        %v209 = vld [vmem:[%s138 + $0xb2] sm:$0x1]
        %v210 = vld [vmem:[%s138 + $0xc2] sm:$0x1]
        %v211 = vld [vmem:[%s138 + $0xd2] sm:$0x1]
        %v212 = vld [vmem:[%s138 + $0xe2] sm:$0x1]
        %v213 = vld [vmem:[%s138 + $0xf2] sm:$0x1]
        %v214 = vld [vmem:[%s138 + $0x102] sm:$0x1]
        %v215 = vld [vmem:[%s138 + $0x112] sm:$0x1]
        %v216 = vld [vmem:[%s138 + $0x122] sm:$0x1]
        %v217 = vld [vmem:[%s138 + $0x132] sm:$0x1]
        %v218 = vld [vmem:[%s138 + $0x142] sm:$0x1]
        %v219 = vld [vmem:[%s138 + $0x152] sm:$0x1]
        %v220 = vld [vmem:[%s138 + $0x162] sm:$0x1]
        %v221 = vld [vmem:[%s138 + $0x172] sm:$0x1]
        %v222 = vld [vmem:[%s138 + $0x3] sm:$0x1]
        %v223 = vld [vmem:[%s138 + $0x13] sm:$0x1]
        %v224 = vld [vmem:[%s138 + $0x23] sm:$0x1]
        %v225 = vld [vmem:[%s138 + $0x33] sm:$0x1]
        %v226 = vld [vmem:[%s138 + $0x43] sm:$0x1]
        %v227 = vld [vmem:[%s138 + $0x53] sm:$0x1]
        %v228 = vld [vmem:[%s138 + $0x63] sm:$0x1]
        %v229 = vld [vmem:[%s138 + $0x73] sm:$0x1]
        %v230 = vld [vmem:[%s138 + $0x83] sm:$0x1]
        %v231 = vld [vmem:[%s138 + $0x93] sm:$0x1]
        %v232 = vld [vmem:[%s138 + $0xa3] sm:$0x1]
        %v233 = vld [vmem:[%s138 + $0xb3] sm:$0x1]
        %v234 = vld [vmem:[%s138 + $0xc3] sm:$0x1]
        %v235 = vld [vmem:[%s138 + $0xd3] sm:$0x1]
        %v236 = vld [vmem:[%s138 + $0xe3] sm:$0x1]
        %v237 = vld [vmem:[%s138 + $0xf3] sm:$0x1]
        %v238 = vld [vmem:[%s138 + $0x103] sm:$0x1]
        %v239 = vld [vmem:[%s138 + $0x113] sm:$0x1]
        %v240 = vld [vmem:[%s138 + $0x123] sm:$0x1]
        %v241 = vld [vmem:[%s138 + $0x133] sm:$0x1]
        %v242 = vld [vmem:[%s138 + $0x143] sm:$0x1]
        %v243 = vld [vmem:[%s138 + $0x153] sm:$0x1]
        %v244 = vld [vmem:[%s138 + $0x163] sm:$0x1]
        %v245 = vld [vmem:[%s138 + $0x173] sm:$0x1]
        %v246 = vadd.f32 %v150, %v174
        %v247 = vadd.f32 %v151, %v175
        %v248 = vadd.f32 %v152, %v176
        %v249 = vadd.f32 %v153, %v177
        %v250 = vadd.f32 %v154, %v178
        %v251 = vadd.f32 %v155, %v179
        %v252 = vadd.f32 %v156, %v180
        %v253 = vadd.f32 %v157, %v181
        %v254 = vadd.f32 %v158, %v182
        %v255 = vadd.f32 %v159, %v183
        %v256 = vadd.f32 %v160, %v184
        %v257 = vadd.f32 %v161, %v185
        %v258 = vadd.f32 %v162, %v186
        %v259 = vadd.f32 %v163, %v187
        %v260 = vadd.f32 %v164, %v188
        %v261 = vadd.f32 %v165, %v189
        %v262 = vadd.f32 %v166, %v190
        %v263 = vadd.f32 %v167, %v191
        %v264 = vadd.f32 %v168, %v192
        %v265 = vadd.f32 %v169, %v193
        %v266 = vadd.f32 %v170, %v194
        %v267 = vadd.f32 %v171, %v195
        %v268 = vadd.f32 %v172, %v196
        %v269 = vadd.f32 %v173, %v197
        %v270 = vadd.f32 %v198, %v222
        %v271 = vadd.f32 %v199, %v223
        %v272 = vadd.f32 %v200, %v224
        %v273 = vadd.f32 %v201, %v225
        %v274 = vadd.f32 %v202, %v226
        %v275 = vadd.f32 %v203, %v227
        %v276 = vadd.f32 %v204, %v228
        %v277 = vadd.f32 %v205, %v229
        %v278 = vadd.f32 %v206, %v230
        %v279 = vadd.f32 %v207, %v231
        %v280 = vadd.f32 %v208, %v232
        %v281 = vadd.f32 %v209, %v233
        %v282 = vadd.f32 %v210, %v234
        %v283 = vadd.f32 %v211, %v235
        %v284 = vadd.f32 %v212, %v236
        %v285 = vadd.f32 %v213, %v237
        %v286 = vadd.f32 %v214, %v238
        %v287 = vadd.f32 %v215, %v239
        %v288 = vadd.f32 %v216, %v240
        %v289 = vadd.f32 %v217, %v241
        %v290 = vadd.f32 %v218, %v242
        %v291 = vadd.f32 %v219, %v243
        %v292 = vadd.f32 %v220, %v244
        %v293 = vadd.f32 %v221, %v245
        %v294 = vadd.f32 %v246, %v270
        %v295 = vadd.f32 %v247, %v271
        %v296 = vadd.f32 %v248, %v272
        %v297 = vadd.f32 %v249, %v273
        %v298 = vadd.f32 %v250, %v274
        %v299 = vadd.f32 %v251, %v275
        %v300 = vadd.f32 %v252, %v276
        %v301 = vadd.f32 %v253, %v277
        %v302 = vadd.f32 %v254, %v278
        %v303 = vadd.f32 %v255, %v279
        %v304 = vadd.f32 %v256, %v280
        %v305 = vadd.f32 %v257, %v281
        %v306 = vadd.f32 %v258, %v282
        %v307 = vadd.f32 %v259, %v283
        %v308 = vadd.f32 %v260, %v284
        %v309 = vadd.f32 %v261, %v285
        %v310 = vadd.f32 %v262, %v286
        %v311 = vadd.f32 %v263, %v287
        %v312 = vadd.f32 %v264, %v288
        %v313 = vadd.f32 %v265, %v289
        %v314 = vadd.f32 %v266, %v290
        %v315 = vadd.f32 %v267, %v291
        %v316 = vadd.f32 %v268, %v292
        %v317 = vadd.f32 %v269, %v293
        %v318 = vld [vmem:[%s138 + $0x4] sm:$0x1]
        %v319 = vld [vmem:[%s138 + $0x14] sm:$0x1]
        %v320 = vld [vmem:[%s138 + $0x24] sm:$0x1]
        %v321 = vld [vmem:[%s138 + $0x34] sm:$0x1]
        %v322 = vld [vmem:[%s138 + $0x44] sm:$0x1]
        %v323 = vld [vmem:[%s138 + $0x54] sm:$0x1]
        %v324 = vld [vmem:[%s138 + $0x64] sm:$0x1]
        %v325 = vld [vmem:[%s138 + $0x74] sm:$0x1]
        %v326 = vld [vmem:[%s138 + $0x84] sm:$0x1]
        %v327 = vld [vmem:[%s138 + $0x94] sm:$0x1]
        %v328 = vld [vmem:[%s138 + $0xa4] sm:$0x1]
        %v329 = vld [vmem:[%s138 + $0xb4] sm:$0x1]
        %v330 = vld [vmem:[%s138 + $0xc4] sm:$0x1]
        %v331 = vld [vmem:[%s138 + $0xd4] sm:$0x1]
        %v332 = vld [vmem:[%s138 + $0xe4] sm:$0x1]
        %v333 = vld [vmem:[%s138 + $0xf4] sm:$0x1]
        %v334 = vld [vmem:[%s138 + $0x104] sm:$0x1]
        %v335 = vld [vmem:[%s138 + $0x114] sm:$0x1]
        %v336 = vld [vmem:[%s138 + $0x124] sm:$0x1]
        %v337 = vld [vmem:[%s138 + $0x134] sm:$0x1]
        %v338 = vld [vmem:[%s138 + $0x144] sm:$0x1]
        %v339 = vld [vmem:[%s138 + $0x154] sm:$0x1]
        %v340 = vld [vmem:[%s138 + $0x164] sm:$0x1]
        %v341 = vld [vmem:[%s138 + $0x174] sm:$0x1]
        %v342 = vld [vmem:[%s138 + $0x5] sm:$0x1]
        %v343 = vld [vmem:[%s138 + $0x15] sm:$0x1]
        %v344 = vld [vmem:[%s138 + $0x25] sm:$0x1]
        %v345 = vld [vmem:[%s138 + $0x35] sm:$0x1]
        %v346 = vld [vmem:[%s138 + $0x45] sm:$0x1]
        %v347 = vld [vmem:[%s138 + $0x55] sm:$0x1]
        %v348 = vld [vmem:[%s138 + $0x65] sm:$0x1]
        %v349 = vld [vmem:[%s138 + $0x75] sm:$0x1]
        %v350 = vld [vmem:[%s138 + $0x85] sm:$0x1]
        %v351 = vld [vmem:[%s138 + $0x95] sm:$0x1]
        %v352 = vld [vmem:[%s138 + $0xa5] sm:$0x1]
        %v353 = vld [vmem:[%s138 + $0xb5] sm:$0x1]
        %v354 = vld [vmem:[%s138 + $0xc5] sm:$0x1]
        %v355 = vld [vmem:[%s138 + $0xd5] sm:$0x1]
        %v356 = vld [vmem:[%s138 + $0xe5] sm:$0x1]
        %v357 = vld [vmem:[%s138 + $0xf5] sm:$0x1]
        %v358 = vld [vmem:[%s138 + $0x105] sm:$0x1]
        %v359 = vld [vmem:[%s138 + $0x115] sm:$0x1]
        %v360 = vld [vmem:[%s138 + $0x125] sm:$0x1]
        %v361 = vld [vmem:[%s138 + $0x135] sm:$0x1]
        %v362 = vld [vmem:[%s138 + $0x145] sm:$0x1]
        %v363 = vld [vmem:[%s138 + $0x155] sm:$0x1]
        %v364 = vld [vmem:[%s138 + $0x165] sm:$0x1]
        %v365 = vld [vmem:[%s138 + $0x175] sm:$0x1]
        %v366 = vld [vmem:[%s138 + $0x6] sm:$0x1]
        %v367 = vld [vmem:[%s138 + $0x16] sm:$0x1]
        %v368 = vld [vmem:[%s138 + $0x26] sm:$0x1]
        %v369 = vld [vmem:[%s138 + $0x36] sm:$0x1]
        %v370 = vld [vmem:[%s138 + $0x46] sm:$0x1]
        %v371 = vld [vmem:[%s138 + $0x56] sm:$0x1]
        %v372 = vld [vmem:[%s138 + $0x66] sm:$0x1]
        %v373 = vld [vmem:[%s138 + $0x76] sm:$0x1]
        %v374 = vld [vmem:[%s138 + $0x86] sm:$0x1]
        %v375 = vld [vmem:[%s138 + $0x96] sm:$0x1]
        %v376 = vld [vmem:[%s138 + $0xa6] sm:$0x1]
        %v377 = vld [vmem:[%s138 + $0xb6] sm:$0x1]
        %v378 = vld [vmem:[%s138 + $0xc6] sm:$0x1]
        %v379 = vld [vmem:[%s138 + $0xd6] sm:$0x1]
        %v380 = vld [vmem:[%s138 + $0xe6] sm:$0x1]
        %v381 = vld [vmem:[%s138 + $0xf6] sm:$0x1]
        %v382 = vld [vmem:[%s138 + $0x106] sm:$0x1]
        %v383 = vld [vmem:[%s138 + $0x116] sm:$0x1]
        %v384 = vld [vmem:[%s138 + $0x126] sm:$0x1]
        %v385 = vld [vmem:[%s138 + $0x136] sm:$0x1]
        %v386 = vld [vmem:[%s138 + $0x146] sm:$0x1]
        %v387 = vld [vmem:[%s138 + $0x156] sm:$0x1]
        %v388 = vld [vmem:[%s138 + $0x166] sm:$0x1]
        %v389 = vld [vmem:[%s138 + $0x176] sm:$0x1]
        %v390 = vld [vmem:[%s138 + $0x7] sm:$0x1]
        %v391 = vld [vmem:[%s138 + $0x17] sm:$0x1]
        %v392 = vld [vmem:[%s138 + $0x27] sm:$0x1]
        %v393 = vld [vmem:[%s138 + $0x37] sm:$0x1]
        %v394 = vld [vmem:[%s138 + $0x47] sm:$0x1]
        %v395 = vld [vmem:[%s138 + $0x57] sm:$0x1]
        %v396 = vld [vmem:[%s138 + $0x67] sm:$0x1]
        %v397 = vld [vmem:[%s138 + $0x77] sm:$0x1]
        %v398 = vld [vmem:[%s138 + $0x87] sm:$0x1]
        %v399 = vld [vmem:[%s138 + $0x97] sm:$0x1]
        %v400 = vld [vmem:[%s138 + $0xa7] sm:$0x1]
        %v401 = vld [vmem:[%s138 + $0xb7] sm:$0x1]
        %v402 = vld [vmem:[%s138 + $0xc7] sm:$0x1]
        %v403 = vld [vmem:[%s138 + $0xd7] sm:$0x1]
        %v404 = vld [vmem:[%s138 + $0xe7] sm:$0x1]
        %v405 = vld [vmem:[%s138 + $0xf7] sm:$0x1]
        %v406 = vld [vmem:[%s138 + $0x107] sm:$0x1]
        %v407 = vld [vmem:[%s138 + $0x117] sm:$0x1]
        %v408 = vld [vmem:[%s138 + $0x127] sm:$0x1]
        %v409 = vld [vmem:[%s138 + $0x137] sm:$0x1]
        %v410 = vld [vmem:[%s138 + $0x147] sm:$0x1]
        %v411 = vld [vmem:[%s138 + $0x157] sm:$0x1]
        %v412 = vld [vmem:[%s138 + $0x167] sm:$0x1]
        %v413 = vld [vmem:[%s138 + $0x177] sm:$0x1]
        %v414 = vadd.f32 %v318, %v342
        %v415 = vadd.f32 %v319, %v343
        %v416 = vadd.f32 %v320, %v344
        %v417 = vadd.f32 %v321, %v345
        %v418 = vadd.f32 %v322, %v346
        %v419 = vadd.f32 %v323, %v347
        %v420 = vadd.f32 %v324, %v348
        %v421 = vadd.f32 %v325, %v349
        %v422 = vadd.f32 %v326, %v350
        %v423 = vadd.f32 %v327, %v351
        %v424 = vadd.f32 %v328, %v352
        %v425 = vadd.f32 %v329, %v353
        %v426 = vadd.f32 %v330, %v354
        %v427 = vadd.f32 %v331, %v355
        %v428 = vadd.f32 %v332, %v356
        %v429 = vadd.f32 %v333, %v357
        %v430 = vadd.f32 %v334, %v358
        %v431 = vadd.f32 %v335, %v359
        %v432 = vadd.f32 %v336, %v360
        %v433 = vadd.f32 %v337, %v361
        %v434 = vadd.f32 %v338, %v362
        %v435 = vadd.f32 %v339, %v363
        %v436 = vadd.f32 %v340, %v364
        %v437 = vadd.f32 %v341, %v365
        %v438 = vadd.f32 %v366, %v390
        %v439 = vadd.f32 %v367, %v391
        %v440 = vadd.f32 %v368, %v392
        %v441 = vadd.f32 %v369, %v393
        %v442 = vadd.f32 %v370, %v394
        %v443 = vadd.f32 %v371, %v395
        %v444 = vadd.f32 %v372, %v396
        %v445 = vadd.f32 %v373, %v397
        %v446 = vadd.f32 %v374, %v398
        %v447 = vadd.f32 %v375, %v399
        %v448 = vadd.f32 %v376, %v400
        %v449 = vadd.f32 %v377, %v401
        %v450 = vadd.f32 %v378, %v402
        %v451 = vadd.f32 %v379, %v403
        %v452 = vadd.f32 %v380, %v404
        %v453 = vadd.f32 %v381, %v405
        %v454 = vadd.f32 %v382, %v406
        %v455 = vadd.f32 %v383, %v407
        %v456 = vadd.f32 %v384, %v408
        %v457 = vadd.f32 %v385, %v409
        %v458 = vadd.f32 %v386, %v410
        %v459 = vadd.f32 %v387, %v411
        %v460 = vadd.f32 %v388, %v412
        %v461 = vadd.f32 %v389, %v413
        %v462 = vadd.f32 %v414, %v438
        %v463 = vadd.f32 %v415, %v439
        %v464 = vadd.f32 %v416, %v440
        %v465 = vadd.f32 %v417, %v441
        %v466 = vadd.f32 %v418, %v442
        %v467 = vadd.f32 %v419, %v443
        %v468 = vadd.f32 %v420, %v444
        %v469 = vadd.f32 %v421, %v445
        %v470 = vadd.f32 %v422, %v446
        %v471 = vadd.f32 %v423, %v447
        %v472 = vadd.f32 %v424, %v448
        %v473 = vadd.f32 %v425, %v449
        %v474 = vadd.f32 %v426, %v450
        %v475 = vadd.f32 %v427, %v451
        %v476 = vadd.f32 %v428, %v452
        %v477 = vadd.f32 %v429, %v453
        %v478 = vadd.f32 %v430, %v454
        %v479 = vadd.f32 %v431, %v455
        %v480 = vadd.f32 %v432, %v456
        %v481 = vadd.f32 %v433, %v457
        %v482 = vadd.f32 %v434, %v458
        %v483 = vadd.f32 %v435, %v459
        %v484 = vadd.f32 %v436, %v460
        %v485 = vadd.f32 %v437, %v461
        %v486 = vld [vmem:[%s138 + $0x8] sm:$0x1]
        %v487 = vld [vmem:[%s138 + $0x18] sm:$0x1]
        %v488 = vld [vmem:[%s138 + $0x28] sm:$0x1]
        %v489 = vld [vmem:[%s138 + $0x38] sm:$0x1]
        %v490 = vld [vmem:[%s138 + $0x48] sm:$0x1]
        %v491 = vld [vmem:[%s138 + $0x58] sm:$0x1]
        %v492 = vld [vmem:[%s138 + $0x68] sm:$0x1]
        %v493 = vld [vmem:[%s138 + $0x78] sm:$0x1]
        %v494 = vld [vmem:[%s138 + $0x88] sm:$0x1]
        %v495 = vld [vmem:[%s138 + $0x98] sm:$0x1]
        %v496 = vld [vmem:[%s138 + $0xa8] sm:$0x1]
        %v497 = vld [vmem:[%s138 + $0xb8] sm:$0x1]
        %v498 = vld [vmem:[%s138 + $0xc8] sm:$0x1]
        %v499 = vld [vmem:[%s138 + $0xd8] sm:$0x1]
        %v500 = vld [vmem:[%s138 + $0xe8] sm:$0x1]
        %v501 = vld [vmem:[%s138 + $0xf8] sm:$0x1]
        %v502 = vld [vmem:[%s138 + $0x108] sm:$0x1]
        %v503 = vld [vmem:[%s138 + $0x118] sm:$0x1]
        %v504 = vld [vmem:[%s138 + $0x128] sm:$0x1]
        %v505 = vld [vmem:[%s138 + $0x138] sm:$0x1]
        %v506 = vld [vmem:[%s138 + $0x148] sm:$0x1]
        %v507 = vld [vmem:[%s138 + $0x158] sm:$0x1]
        %v508 = vld [vmem:[%s138 + $0x168] sm:$0x1]
        %v509 = vld [vmem:[%s138 + $0x178] sm:$0x1]
        %v510 = vld [vmem:[%s138 + $0x9] sm:$0x1]
        %v511 = vld [vmem:[%s138 + $0x19] sm:$0x1]
        %v512 = vld [vmem:[%s138 + $0x29] sm:$0x1]
        %v513 = vld [vmem:[%s138 + $0x39] sm:$0x1]
        %v514 = vld [vmem:[%s138 + $0x49] sm:$0x1]
        %v515 = vld [vmem:[%s138 + $0x59] sm:$0x1]
        %v516 = vld [vmem:[%s138 + $0x69] sm:$0x1]
        %v517 = vld [vmem:[%s138 + $0x79] sm:$0x1]
        %v518 = vld [vmem:[%s138 + $0x89] sm:$0x1]
        %v519 = vld [vmem:[%s138 + $0x99] sm:$0x1]
        %v520 = vld [vmem:[%s138 + $0xa9] sm:$0x1]
        %v521 = vld [vmem:[%s138 + $0xb9] sm:$0x1]
        %v522 = vld [vmem:[%s138 + $0xc9] sm:$0x1]
        %v523 = vld [vmem:[%s138 + $0xd9] sm:$0x1]
        %v524 = vld [vmem:[%s138 + $0xe9] sm:$0x1]
        %v525 = vld [vmem:[%s138 + $0xf9] sm:$0x1]
        %v526 = vld [vmem:[%s138 + $0x109] sm:$0x1]
        %v527 = vld [vmem:[%s138 + $0x119] sm:$0x1]
        %v528 = vld [vmem:[%s138 + $0x129] sm:$0x1]
        %v529 = vld [vmem:[%s138 + $0x139] sm:$0x1]
        %v530 = vld [vmem:[%s138 + $0x149] sm:$0x1]
        %v531 = vld [vmem:[%s138 + $0x159] sm:$0x1]
        %v532 = vld [vmem:[%s138 + $0x169] sm:$0x1]
        %v533 = vld [vmem:[%s138 + $0x179] sm:$0x1]
        %v534 = vld [vmem:[%s138 + $0xa] sm:$0x1]
        %v535 = vld [vmem:[%s138 + $0x1a] sm:$0x1]
        %v536 = vld [vmem:[%s138 + $0x2a] sm:$0x1]
        %v537 = vld [vmem:[%s138 + $0x3a] sm:$0x1]
        %v538 = vld [vmem:[%s138 + $0x4a] sm:$0x1]
        %v539 = vld [vmem:[%s138 + $0x5a] sm:$0x1]
        %v540 = vld [vmem:[%s138 + $0x6a] sm:$0x1]
        %v541 = vld [vmem:[%s138 + $0x7a] sm:$0x1]
        %v542 = vld [vmem:[%s138 + $0x8a] sm:$0x1]
        %v543 = vld [vmem:[%s138 + $0x9a] sm:$0x1]
        %v544 = vld [vmem:[%s138 + $0xaa] sm:$0x1]
        %v545 = vld [vmem:[%s138 + $0xba] sm:$0x1]
        %v546 = vld [vmem:[%s138 + $0xca] sm:$0x1]
        %v547 = vld [vmem:[%s138 + $0xda] sm:$0x1]
        %v548 = vld [vmem:[%s138 + $0xea] sm:$0x1]
        %v549 = vld [vmem:[%s138 + $0xfa] sm:$0x1]
        %v550 = vld [vmem:[%s138 + $0x10a] sm:$0x1]
        %v551 = vld [vmem:[%s138 + $0x11a] sm:$0x1]
        %v552 = vld [vmem:[%s138 + $0x12a] sm:$0x1]
        %v553 = vld [vmem:[%s138 + $0x13a] sm:$0x1]
        %v554 = vld [vmem:[%s138 + $0x14a] sm:$0x1]
        %v555 = vld [vmem:[%s138 + $0x15a] sm:$0x1]
        %v556 = vld [vmem:[%s138 + $0x16a] sm:$0x1]
        %v557 = vld [vmem:[%s138 + $0x17a] sm:$0x1]
        %v558 = vld [vmem:[%s138 + $0xb] sm:$0x1]
        %v559 = vld [vmem:[%s138 + $0x1b] sm:$0x1]
        %v560 = vld [vmem:[%s138 + $0x2b] sm:$0x1]
        %v561 = vld [vmem:[%s138 + $0x3b] sm:$0x1]
        %v562 = vld [vmem:[%s138 + $0x4b] sm:$0x1]
        %v563 = vld [vmem:[%s138 + $0x5b] sm:$0x1]
        %v564 = vld [vmem:[%s138 + $0x6b] sm:$0x1]
        %v565 = vld [vmem:[%s138 + $0x7b] sm:$0x1]
        %v566 = vld [vmem:[%s138 + $0x8b] sm:$0x1]
        %v567 = vld [vmem:[%s138 + $0x9b] sm:$0x1]
        %v568 = vld [vmem:[%s138 + $0xab] sm:$0x1]
        %v569 = vld [vmem:[%s138 + $0xbb] sm:$0x1]
        %v570 = vld [vmem:[%s138 + $0xcb] sm:$0x1]
        %v571 = vld [vmem:[%s138 + $0xdb] sm:$0x1]
        %v572 = vld [vmem:[%s138 + $0xeb] sm:$0x1]
        %v573 = vld [vmem:[%s138 + $0xfb] sm:$0x1]
        %v574 = vld [vmem:[%s138 + $0x10b] sm:$0x1]
        %v575 = vld [vmem:[%s138 + $0x11b] sm:$0x1]
        %v576 = vld [vmem:[%s138 + $0x12b] sm:$0x1]
        %v577 = vld [vmem:[%s138 + $0x13b] sm:$0x1]
        %v578 = vld [vmem:[%s138 + $0x14b] sm:$0x1]
        %v579 = vld [vmem:[%s138 + $0x15b] sm:$0x1]
        %v580 = vld [vmem:[%s138 + $0x16b] sm:$0x1]
        %v581 = vld [vmem:[%s138 + $0x17b] sm:$0x1]
        %v582 = vadd.f32 %v486, %v510
        %v583 = vadd.f32 %v487, %v511
        %v584 = vadd.f32 %v488, %v512
        %v585 = vadd.f32 %v489, %v513
        %v586 = vadd.f32 %v490, %v514
        %v587 = vadd.f32 %v491, %v515
        %v588 = vadd.f32 %v492, %v516
        %v589 = vadd.f32 %v493, %v517
        %v590 = vadd.f32 %v494, %v518
        %v591 = vadd.f32 %v495, %v519
        %v592 = vadd.f32 %v496, %v520
        %v593 = vadd.f32 %v497, %v521
        %v594 = vadd.f32 %v498, %v522
        %v595 = vadd.f32 %v499, %v523
        %v596 = vadd.f32 %v500, %v524
        %v597 = vadd.f32 %v501, %v525
        %v598 = vadd.f32 %v502, %v526
        %v599 = vadd.f32 %v503, %v527
        %v600 = vadd.f32 %v504, %v528
        %v601 = vadd.f32 %v505, %v529
        %v602 = vadd.f32 %v506, %v530
        %v603 = vadd.f32 %v507, %v531
        %v604 = vadd.f32 %v508, %v532
        %v605 = vadd.f32 %v509, %v533
        %v606 = vadd.f32 %v534, %v558
        %v607 = vadd.f32 %v535, %v559
        %v608 = vadd.f32 %v536, %v560
        %v609 = vadd.f32 %v537, %v561
        %v610 = vadd.f32 %v538, %v562
        %v611 = vadd.f32 %v539, %v563
        %v612 = vadd.f32 %v540, %v564
        %v613 = vadd.f32 %v541, %v565
        %v614 = vadd.f32 %v542, %v566
        %v615 = vadd.f32 %v543, %v567
        %v616 = vadd.f32 %v544, %v568
        %v617 = vadd.f32 %v545, %v569
        %v618 = vadd.f32 %v546, %v570
        %v619 = vadd.f32 %v547, %v571
        %v620 = vadd.f32 %v548, %v572
        %v621 = vadd.f32 %v549, %v573
        %v622 = vadd.f32 %v550, %v574
        %v623 = vadd.f32 %v551, %v575
        %v624 = vadd.f32 %v552, %v576
        %v625 = vadd.f32 %v553, %v577
        %v626 = vadd.f32 %v554, %v578
        %v627 = vadd.f32 %v555, %v579
        %v628 = vadd.f32 %v556, %v580
        %v629 = vadd.f32 %v557, %v581
        %v630 = vadd.f32 %v582, %v606
        %v631 = vadd.f32 %v583, %v607
        %v632 = vadd.f32 %v584, %v608
        %v633 = vadd.f32 %v585, %v609
        %v634 = vadd.f32 %v586, %v610
        %v635 = vadd.f32 %v587, %v611
        %v636 = vadd.f32 %v588, %v612
        %v637 = vadd.f32 %v589, %v613
        %v638 = vadd.f32 %v590, %v614
        %v639 = vadd.f32 %v591, %v615
        %v640 = vadd.f32 %v592, %v616
        %v641 = vadd.f32 %v593, %v617
        %v642 = vadd.f32 %v594, %v618
        %v643 = vadd.f32 %v595, %v619
        %v644 = vadd.f32 %v596, %v620
        %v645 = vadd.f32 %v597, %v621
        %v646 = vadd.f32 %v598, %v622
        %v647 = vadd.f32 %v599, %v623
        %v648 = vadd.f32 %v600, %v624
        %v649 = vadd.f32 %v601, %v625
        %v650 = vadd.f32 %v602, %v626
        %v651 = vadd.f32 %v603, %v627
        %v652 = vadd.f32 %v604, %v628
        %v653 = vadd.f32 %v605, %v629
        %v654 = vld [vmem:[%s138 + $0xc] sm:$0x1]
        %v655 = vld [vmem:[%s138 + $0x1c] sm:$0x1]
        %v656 = vld [vmem:[%s138 + $0x2c] sm:$0x1]
        %v657 = vld [vmem:[%s138 + $0x3c] sm:$0x1]
        %v658 = vld [vmem:[%s138 + $0x4c] sm:$0x1]
        %v659 = vld [vmem:[%s138 + $0x5c] sm:$0x1]
        %v660 = vld [vmem:[%s138 + $0x6c] sm:$0x1]
        %v661 = vld [vmem:[%s138 + $0x7c] sm:$0x1]
        %v662 = vld [vmem:[%s138 + $0x8c] sm:$0x1]
        %v663 = vld [vmem:[%s138 + $0x9c] sm:$0x1]
        %v664 = vld [vmem:[%s138 + $0xac] sm:$0x1]
        %v665 = vld [vmem:[%s138 + $0xbc] sm:$0x1]
        %v666 = vld [vmem:[%s138 + $0xcc] sm:$0x1]
        %v667 = vld [vmem:[%s138 + $0xdc] sm:$0x1]
        %v668 = vld [vmem:[%s138 + $0xec] sm:$0x1]
        %v669 = vld [vmem:[%s138 + $0xfc] sm:$0x1]
        %v670 = vld [vmem:[%s138 + $0x10c] sm:$0x1]
        %v671 = vld [vmem:[%s138 + $0x11c] sm:$0x1]
        %v672 = vld [vmem:[%s138 + $0x12c] sm:$0x1]
        %v673 = vld [vmem:[%s138 + $0x13c] sm:$0x1]
        %v674 = vld [vmem:[%s138 + $0x14c] sm:$0x1]
        %v675 = vld [vmem:[%s138 + $0x15c] sm:$0x1]
        %v676 = vld [vmem:[%s138 + $0x16c] sm:$0x1]
        %v677 = vld [vmem:[%s138 + $0x17c] sm:$0x1]
        %v678 = vld [vmem:[%s138 + $0xd] sm:$0x1]
        %v679 = vld [vmem:[%s138 + $0x1d] sm:$0x1]
        %v680 = vld [vmem:[%s138 + $0x2d] sm:$0x1]
        %v681 = vld [vmem:[%s138 + $0x3d] sm:$0x1]
        %v682 = vld [vmem:[%s138 + $0x4d] sm:$0x1]
        %v683 = vld [vmem:[%s138 + $0x5d] sm:$0x1]
        %v684 = vld [vmem:[%s138 + $0x6d] sm:$0x1]
        %v685 = vld [vmem:[%s138 + $0x7d] sm:$0x1]
        %v686 = vld [vmem:[%s138 + $0x8d] sm:$0x1]
        %v687 = vld [vmem:[%s138 + $0x9d] sm:$0x1]
        %v688 = vld [vmem:[%s138 + $0xad] sm:$0x1]
        %v689 = vld [vmem:[%s138 + $0xbd] sm:$0x1]
        %v690 = vld [vmem:[%s138 + $0xcd] sm:$0x1]
        %v691 = vld [vmem:[%s138 + $0xdd] sm:$0x1]
        %v692 = vld [vmem:[%s138 + $0xed] sm:$0x1]
        %v693 = vld [vmem:[%s138 + $0xfd] sm:$0x1]
        %v694 = vld [vmem:[%s138 + $0x10d] sm:$0x1]
        %v695 = vld [vmem:[%s138 + $0x11d] sm:$0x1]
        %v696 = vld [vmem:[%s138 + $0x12d] sm:$0x1]
        %v697 = vld [vmem:[%s138 + $0x13d] sm:$0x1]
        %v698 = vld [vmem:[%s138 + $0x14d] sm:$0x1]
        %v699 = vld [vmem:[%s138 + $0x15d] sm:$0x1]
        %v700 = vld [vmem:[%s138 + $0x16d] sm:$0x1]
        %v701 = vld [vmem:[%s138 + $0x17d] sm:$0x1]
        %v702 = vld [vmem:[%s138 + $0xe] sm:$0x1]
        %v703 = vld [vmem:[%s138 + $0x1e] sm:$0x1]
        %v704 = vld [vmem:[%s138 + $0x2e] sm:$0x1]
        %v705 = vld [vmem:[%s138 + $0x3e] sm:$0x1]
        %v706 = vld [vmem:[%s138 + $0x4e] sm:$0x1]
        %v707 = vld [vmem:[%s138 + $0x5e] sm:$0x1]
        %v708 = vld [vmem:[%s138 + $0x6e] sm:$0x1]
        %v709 = vld [vmem:[%s138 + $0x7e] sm:$0x1]
        %v710 = vld [vmem:[%s138 + $0x8e] sm:$0x1]
        %v711 = vld [vmem:[%s138 + $0x9e] sm:$0x1]
        %v712 = vld [vmem:[%s138 + $0xae] sm:$0x1]
        %v713 = vld [vmem:[%s138 + $0xbe] sm:$0x1]
        %v714 = vld [vmem:[%s138 + $0xce] sm:$0x1]
        %v715 = vld [vmem:[%s138 + $0xde] sm:$0x1]
        %v716 = vld [vmem:[%s138 + $0xee] sm:$0x1]
        %v717 = vld [vmem:[%s138 + $0xfe] sm:$0x1]
        %v718 = vld [vmem:[%s138 + $0x10e] sm:$0x1]
        %v719 = vld [vmem:[%s138 + $0x11e] sm:$0x1]
        %v720 = vld [vmem:[%s138 + $0x12e] sm:$0x1]
        %v721 = vld [vmem:[%s138 + $0x13e] sm:$0x1]
        %v722 = vld [vmem:[%s138 + $0x14e] sm:$0x1]
        %v723 = vld [vmem:[%s138 + $0x15e] sm:$0x1]
        %v724 = vld [vmem:[%s138 + $0x16e] sm:$0x1]
        %v725 = vld [vmem:[%s138 + $0x17e] sm:$0x1]
        %v726 = vld [vmem:[%s138 + $0xf] sm:$0x1]
        %v727 = vld [vmem:[%s138 + $0x1f] sm:$0x1]
        %v728 = vld [vmem:[%s138 + $0x2f] sm:$0x1]
        %v729 = vld [vmem:[%s138 + $0x3f] sm:$0x1]
        %v730 = vld [vmem:[%s138 + $0x4f] sm:$0x1]
        %v731 = vld [vmem:[%s138 + $0x5f] sm:$0x1]
        %v732 = vld [vmem:[%s138 + $0x6f] sm:$0x1]
        %v733 = vld [vmem:[%s138 + $0x7f] sm:$0x1]
        %v734 = vld [vmem:[%s138 + $0x8f] sm:$0x1]
        %v735 = vld [vmem:[%s138 + $0x9f] sm:$0x1]
        %v736 = vld [vmem:[%s138 + $0xaf] sm:$0x1]
        %v737 = vld [vmem:[%s138 + $0xbf] sm:$0x1]
        %v738 = vld [vmem:[%s138 + $0xcf] sm:$0x1]
        %v739 = vld [vmem:[%s138 + $0xdf] sm:$0x1]
        %v740 = vld [vmem:[%s138 + $0xef] sm:$0x1]
        %v741 = vld [vmem:[%s138 + $0xff] sm:$0x1]
        %v742 = vld [vmem:[%s138 + $0x10f] sm:$0x1]
        %v743 = vld [vmem:[%s138 + $0x11f] sm:$0x1]
        %v744 = vld [vmem:[%s138 + $0x12f] sm:$0x1]
        %v745 = vld [vmem:[%s138 + $0x13f] sm:$0x1]
        %v746 = vld [vmem:[%s138 + $0x14f] sm:$0x1]
        %v747 = vld [vmem:[%s138 + $0x15f] sm:$0x1]
        %v748 = vld [vmem:[%s138 + $0x16f] sm:$0x1]
        %v749 = vld [vmem:[%s138 + $0x17f] sm:$0x1]
        %v750 = vadd.f32 %v654, %v678
        %v751 = vadd.f32 %v655, %v679
        %v752 = vadd.f32 %v656, %v680
        %v753 = vadd.f32 %v657, %v681
        %v754 = vadd.f32 %v658, %v682
        %v755 = vadd.f32 %v659, %v683
        %v756 = vadd.f32 %v660, %v684
        %v757 = vadd.f32 %v661, %v685
        %v758 = vadd.f32 %v662, %v686
        %v759 = vadd.f32 %v663, %v687
        %v760 = vadd.f32 %v664, %v688
        %v761 = vadd.f32 %v665, %v689
        %v762 = vadd.f32 %v666, %v690
        %v763 = vadd.f32 %v667, %v691
        %v764 = vadd.f32 %v668, %v692
        %v765 = vadd.f32 %v669, %v693
        %v766 = vadd.f32 %v670, %v694
        %v767 = vadd.f32 %v671, %v695
        %v768 = vadd.f32 %v672, %v696
        %v769 = vadd.f32 %v673, %v697
        %v770 = vadd.f32 %v674, %v698
        %v771 = vadd.f32 %v675, %v699
        %v772 = vadd.f32 %v676, %v700
        %v773 = vadd.f32 %v677, %v701
        %v774 = vadd.f32 %v702, %v726
        %v775 = vadd.f32 %v703, %v727
        %v776 = vadd.f32 %v704, %v728
        %v777 = vadd.f32 %v705, %v729
        %v778 = vadd.f32 %v706, %v730
        %v779 = vadd.f32 %v707, %v731
        %v780 = vadd.f32 %v708, %v732
        %v781 = vadd.f32 %v709, %v733
        %v782 = vadd.f32 %v710, %v734
        %v783 = vadd.f32 %v711, %v735
        %v784 = vadd.f32 %v712, %v736
        %v785 = vadd.f32 %v713, %v737
        %v786 = vadd.f32 %v714, %v738
        %v787 = vadd.f32 %v715, %v739
        %v788 = vadd.f32 %v716, %v740
        %v789 = vadd.f32 %v717, %v741
        %v790 = vadd.f32 %v718, %v742
        %v791 = vadd.f32 %v719, %v743
        %v792 = vadd.f32 %v720, %v744
        %v793 = vadd.f32 %v721, %v745
        %v794 = vadd.f32 %v722, %v746
        %v795 = vadd.f32 %v723, %v747
        %v796 = vadd.f32 %v724, %v748
        %v797 = vadd.f32 %v725, %v749
        %v798 = vadd.f32 %v750, %v774
        %v799 = vadd.f32 %v751, %v775
        %v800 = vadd.f32 %v752, %v776
        %v801 = vadd.f32 %v753, %v777
        %v802 = vadd.f32 %v754, %v778
        %v803 = vadd.f32 %v755, %v779
        %v804 = vadd.f32 %v756, %v780
        %v805 = vadd.f32 %v757, %v781
        %v806 = vadd.f32 %v758, %v782
        %v807 = vadd.f32 %v759, %v783
        %v808 = vadd.f32 %v760, %v784
        %v809 = vadd.f32 %v761, %v785
        %v810 = vadd.f32 %v762, %v786
        %v811 = vadd.f32 %v763, %v787
        %v812 = vadd.f32 %v764, %v788
        %v813 = vadd.f32 %v765, %v789
        %v814 = vadd.f32 %v766, %v790
        %v815 = vadd.f32 %v767, %v791
        %v816 = vadd.f32 %v768, %v792
        %v817 = vadd.f32 %v769, %v793
        %v818 = vadd.f32 %v770, %v794
        %v819 = vadd.f32 %v771, %v795
        %v820 = vadd.f32 %v772, %v796
        %v821 = vadd.f32 %v773, %v797
        %v846 = vrot.slane %v295, 7
        %vm847 = vcmask 1041409
        %v848 = vsel %vm847, %v846, %v294
        %v849 = vrot.slane %v296, 6
        %vm850 = vcmask 1042434
        %v851 = vsel %vm850, %v849, %v848
        %v852 = vrot.slane %v297, 5
        %vm853 = vcmask 1043459
        %v854 = vsel %vm853, %v852, %v851
        %v855 = vrot.slane %v298, 4
        %vm856 = vcmask 1044484
        %v857 = vsel %vm856, %v855, %v854
        %v858 = vrot.slane %v299, 3
        %vm859 = vcmask 1045509
        %v860 = vsel %vm859, %v858, %v857
        %v861 = vrot.slane %v300, 2
        %vm862 = vcmask 1046534
        %v863 = vsel %vm862, %v861, %v860
        %v864 = vrot.slane %v301, 1
        %vm865 = vcmask 1047559
        %v866 = vsel %vm865, %v864, %v863
        %v867 = vrot.slane %v303, 7
        %v868 = vsel %vm847, %v867, %v302
        %v869 = vrot.slane %v304, 6
        %v870 = vsel %vm850, %v869, %v868
        %v871 = vrot.slane %v305, 5
        %v872 = vsel %vm853, %v871, %v870
        %v873 = vrot.slane %v306, 4
        %v874 = vsel %vm856, %v873, %v872
        %v875 = vrot.slane %v307, 3
        %v876 = vsel %vm859, %v875, %v874
        %v877 = vrot.slane %v308, 2
        %v878 = vsel %vm862, %v877, %v876
        %v879 = vrot.slane %v309, 1
        %v880 = vsel %vm865, %v879, %v878
        %v881 = vrot.slane %v311, 7
        %v882 = vsel %vm847, %v881, %v310
        %v883 = vrot.slane %v312, 6
        %v884 = vsel %vm850, %v883, %v882
        %v885 = vrot.slane %v313, 5
        %v886 = vsel %vm853, %v885, %v884
        %v887 = vrot.slane %v314, 4
        %v888 = vsel %vm856, %v887, %v886
        %v889 = vrot.slane %v315, 3
        %v890 = vsel %vm859, %v889, %v888
        %v891 = vrot.slane %v316, 2
        %v892 = vsel %vm862, %v891, %v890
        %v893 = vrot.slane %v317, 1
        %v894 = vsel %vm865, %v893, %v892
        %v922 = vrot.slane %v463, 7
        %v923 = vsel %vm847, %v922, %v462
        %v924 = vrot.slane %v464, 6
        %v925 = vsel %vm850, %v924, %v923
        %v926 = vrot.slane %v465, 5
        %v927 = vsel %vm853, %v926, %v925
        %v928 = vrot.slane %v466, 4
        %v929 = vsel %vm856, %v928, %v927
        %v930 = vrot.slane %v467, 3
        %v931 = vsel %vm859, %v930, %v929
        %v932 = vrot.slane %v468, 2
        %v933 = vsel %vm862, %v932, %v931
        %v934 = vrot.slane %v469, 1
        %v935 = vsel %vm865, %v934, %v933
        %v936 = vrot.slane %v471, 7
        %v937 = vsel %vm847, %v936, %v470
        %v938 = vrot.slane %v472, 6
        %v939 = vsel %vm850, %v938, %v937
        %v940 = vrot.slane %v473, 5
        %v941 = vsel %vm853, %v940, %v939
        %v942 = vrot.slane %v474, 4
        %v943 = vsel %vm856, %v942, %v941
        %v944 = vrot.slane %v475, 3
        %v945 = vsel %vm859, %v944, %v943
        %v946 = vrot.slane %v476, 2
        %v947 = vsel %vm862, %v946, %v945
        %v948 = vrot.slane %v477, 1
        %v949 = vsel %vm865, %v948, %v947
        %v950 = vrot.slane %v479, 7
        %v951 = vsel %vm847, %v950, %v478
        %v952 = vrot.slane %v480, 6
        %v953 = vsel %vm850, %v952, %v951
        %v954 = vrot.slane %v481, 5
        %v955 = vsel %vm853, %v954, %v953
        %v956 = vrot.slane %v482, 4
        %v957 = vsel %vm856, %v956, %v955
        %v958 = vrot.slane %v483, 3
        %v959 = vsel %vm859, %v958, %v957
        %v960 = vrot.slane %v484, 2
        %v961 = vsel %vm862, %v960, %v959
        %v962 = vrot.slane %v485, 1
        %v963 = vsel %vm865, %v962, %v961
        %964 = vrot.lane.b32.xlu0 %v935, 32
        %v965 = vpop.permute.xlu0 %964
        %966 = vrot.lane.b32.xlu0 %v949, 32
        %v967 = vpop.permute.xlu0 %966
        %968 = vrot.lane.b32.xlu0 %v963, 32
        %v969 = vpop.permute.xlu0 %968
        %v997 = vrot.slane %v631, 7
        %v998 = vsel %vm847, %v997, %v630
        %v999 = vrot.slane %v632, 6
        %v1000 = vsel %vm850, %v999, %v998
        %v1001 = vrot.slane %v633, 5
        %v1002 = vsel %vm853, %v1001, %v1000
        %v1003 = vrot.slane %v634, 4
        %v1004 = vsel %vm856, %v1003, %v1002
        %v1005 = vrot.slane %v635, 3
        %v1006 = vsel %vm859, %v1005, %v1004
        %v1007 = vrot.slane %v636, 2
        %v1008 = vsel %vm862, %v1007, %v1006
        %v1009 = vrot.slane %v637, 1
        %v1010 = vsel %vm865, %v1009, %v1008
        %v1011 = vrot.slane %v639, 7
        %v1012 = vsel %vm847, %v1011, %v638
        %v1013 = vrot.slane %v640, 6
        %v1014 = vsel %vm850, %v1013, %v1012
        %v1015 = vrot.slane %v641, 5
        %v1016 = vsel %vm853, %v1015, %v1014
        %v1017 = vrot.slane %v642, 4
        %v1018 = vsel %vm856, %v1017, %v1016
        %v1019 = vrot.slane %v643, 3
        %v1020 = vsel %vm859, %v1019, %v1018
        %v1021 = vrot.slane %v644, 2
        %v1022 = vsel %vm862, %v1021, %v1020
        %v1023 = vrot.slane %v645, 1
        %v1024 = vsel %vm865, %v1023, %v1022
        %v1025 = vrot.slane %v647, 7
        %v1026 = vsel %vm847, %v1025, %v646
        %v1027 = vrot.slane %v648, 6
        %v1028 = vsel %vm850, %v1027, %v1026
        %v1029 = vrot.slane %v649, 5
        %v1030 = vsel %vm853, %v1029, %v1028
        %v1031 = vrot.slane %v650, 4
        %v1032 = vsel %vm856, %v1031, %v1030
        %v1033 = vrot.slane %v651, 3
        %v1034 = vsel %vm859, %v1033, %v1032
        %v1035 = vrot.slane %v652, 2
        %v1036 = vsel %vm862, %v1035, %v1034
        %v1037 = vrot.slane %v653, 1
        %v1038 = vsel %vm865, %v1037, %v1036
        %1039 = vrot.lane.b32.xlu0 %v1010, 64
        %v1040 = vpop.permute.xlu0 %1039
        %1041 = vrot.lane.b32.xlu0 %v1024, 64
        %v1042 = vpop.permute.xlu0 %1041
        %1043 = vrot.lane.b32.xlu0 %v1038, 64
        %v1044 = vpop.permute.xlu0 %1043
        %v1072 = vrot.slane %v799, 7
        %v1073 = vsel %vm847, %v1072, %v798
        %v1074 = vrot.slane %v800, 6
        %v1075 = vsel %vm850, %v1074, %v1073
        %v1076 = vrot.slane %v801, 5
        %v1077 = vsel %vm853, %v1076, %v1075
        %v1078 = vrot.slane %v802, 4
        %v1079 = vsel %vm856, %v1078, %v1077
        %v1080 = vrot.slane %v803, 3
        %v1081 = vsel %vm859, %v1080, %v1079
        %v1082 = vrot.slane %v804, 2
        %v1083 = vsel %vm862, %v1082, %v1081
        %v1084 = vrot.slane %v805, 1
        %v1085 = vsel %vm865, %v1084, %v1083
        %v1086 = vrot.slane %v807, 7
        %v1087 = vsel %vm847, %v1086, %v806
        %v1088 = vrot.slane %v808, 6
        %v1089 = vsel %vm850, %v1088, %v1087
        %v1090 = vrot.slane %v809, 5
        %v1091 = vsel %vm853, %v1090, %v1089
        %v1092 = vrot.slane %v810, 4
        %v1093 = vsel %vm856, %v1092, %v1091
        %v1094 = vrot.slane %v811, 3
        %v1095 = vsel %vm859, %v1094, %v1093
        %v1096 = vrot.slane %v812, 2
        %v1097 = vsel %vm862, %v1096, %v1095
        %v1098 = vrot.slane %v813, 1
        %v1099 = vsel %vm865, %v1098, %v1097
        %v1100 = vrot.slane %v815, 7
        %v1101 = vsel %vm847, %v1100, %v814
        %v1102 = vrot.slane %v816, 6
        %v1103 = vsel %vm850, %v1102, %v1101
        %v1104 = vrot.slane %v817, 5
        %v1105 = vsel %vm853, %v1104, %v1103
        %v1106 = vrot.slane %v818, 4
        %v1107 = vsel %vm856, %v1106, %v1105
        %v1108 = vrot.slane %v819, 3
        %v1109 = vsel %vm859, %v1108, %v1107
        %v1110 = vrot.slane %v820, 2
        %v1111 = vsel %vm862, %v1110, %v1109
        %v1112 = vrot.slane %v821, 1
        %v1113 = vsel %vm865, %v1112, %v1111
        %1114 = vrot.lane.b32.xlu0 %v1085, 96
        %v1115 = vpop.permute.xlu0 %1114
        %1116 = vrot.lane.b32.xlu0 %v1099, 96
        %v1117 = vpop.permute.xlu0 %1116
        %1118 = vrot.lane.b32.xlu0 %v1113, 96
        %v1119 = vpop.permute.xlu0 %1118
        %vm1123 = vcmask 261120
        %v1124 = vsel %vm1123, %v866, %v965
        %v1125 = vsel %vm1123, %v880, %v967
        %v1126 = vsel %vm1123, %v894, %v969
        %vm1127 = vcmask 523264
        %v1128 = vsel %vm1127, %v1124, %v1040
        %v1129 = vsel %vm1127, %v1125, %v1042
        %v1130 = vsel %vm1127, %v1126, %v1044
        %vm1131 = vcmask 785408
        %v1132 = vsel %vm1131, %v1128, %v1115
        %v1133 = vsel %vm1131, %v1129, %v1117
        %v1134 = vsel %vm1131, %v1130, %v1119
        %v1135 = vmul.f32 %v1132, 0.25
        %v1136 = vmul.f32 %v1133, 0.25
        %v1137 = vmul.f32 %v1134, 0.25
        %1138 = vst [vmem:[%s127] sm:$0xff] %v1135
        %1139 = vst [vmem:[%s127 + $0x8] sm:$0xff] %v1136
        %1140 = vst [vmem:[%s127 + $0x10] sm:$0xff] %v1137
        %s1141 = sand.u32 %s49, 1
        %s1142 = scalar_lea.sflag [#allocation3], %s1141
        %s1143 = sand.u32 %s49, 1
        %s1144 = smul.addr %s1143, 24
        %s1145 = scalar_lea.vmem [#allocation2], %s1144
        // Predicated region
        $region25: #{tpu_custom_call.1} parent=23 // pred_check
          %p1146 = pneg %p59
        $region26: #{tpu_custom_call.1} parent=23 // pred_check_branch
          %1148 = sbr.rel (%p1146) target = $region28
        $region27: #{tpu_custom_call.1} parent=23 // pred_region
          %s1149 = smul.u32 3, %s15
          %s1150 = ssub.s32 7, %s1149
          %p1151 = scmp.lt.s32.totalorder %s1150, 3
          %s1152 = scalar_select %p1151, %s1150, 3
          %s1153 = smul.u32 128, %s1152
          %s1155 = ssub.s32 384, %s1153
          %1156 = vsyncadd %s1142, %s1155
          %p1157 = scmp.ne.s32.totalorder 0, %s1153
          %s1158 = smul.addr %s1149, 128
          %s1159 = scalar_lea.hbm %s1, %s1158
          %s1160 = smul.u32 8, %s1152
          %s1161 = sshll.u32 %s1145, 4
          %s1162 = int_to_ptr.vmem [resolvable:$true] %s1161
          %s1163 = sshll.u32 %s1160, 4
          %1167 = dma.vmem_to_hbm [thread:$0]  (%p1157), %s1162, %s1163, %s1159, %s1142, 128, 128, 8
        $region28: #{tpu_custom_call.1} parent=23 // pred_fallthru
          _
      $region24: #{tpu_custom_call.1} parent=5 // pred_fallthru
        _
      %p1168 = scmp.le.s32.totalorder 2, %s10
      // Predicated region
      $region29: #{tpu_custom_call.1} parent=5 // pred_check
        %p1169 = pneg %p1168
      $region30: #{tpu_custom_call.1} parent=5 // pred_check_branch
        %1171 = sbr.rel (%p1169) target = $region32
      $region31: #{tpu_custom_call.1} parent=5 // pred_region
        %s1172 = ssub.s32 %s10, 2
        // Predicated region
        $region33: #{tpu_custom_call.1} parent=31 // pred_check
          %p1173 = pneg %p65
        $region34: #{tpu_custom_call.1} parent=31 // pred_check_branch
          %1175 = sbr.rel (%p1173) target = $region36
        $region35: #{tpu_custom_call.1} parent=31 // pred_region
          %s1176 = sand.u32 %s50, 1
          %s1177 = scalar_lea.sflag [#allocation3], %s1176
          %s1178 = sand.u32 %s50, 1
          %s1179 = smul.addr %s1178, 24
          %s1180 = scalar_lea.vmem [#allocation2], %s1179
          %1181 = dma.done %s1177, 384
        $region36: #{tpu_custom_call.1} parent=31 // pred_fallthru
          _
      $region32: #{tpu_custom_call.1} parent=5 // pred_fallthru
        _
    $region6: #{tpu_custom_call.1} parent=1 // loop_footer
      %s14 = sadd.s32 1, %s10
    $region7: #{tpu_custom_call.1} parent=1 // loop_footer_branch
      %9 = sbr.rel target = $region3
    $region8: #{tpu_custom_call.1} parent=1 // loop_exit
      _
    %1182 = vsyncpa [#allocation3], 1
    %s1183 = scalar_lea.sflag [#allocation3], 1
    %1184 = vsyncpa %s1183, 1

</llo_original>
